<compile_context>
chip_gen: v5e
topology: v5e:2x2
jax: 0.10.0
libtpu: 0.0.40
codegen_flags: <defaults>
</compile_context>

<pallas_src>
import jax
import jax.numpy as jnp
from jax.experimental import pallas as pl
from jax.experimental.pallas import tpu as pltpu


# ---------------------------------------------------------------------------
# Fused kernel: all LSTM layers + final dense in one invocation.
# PyTorch gate order: [i, f, g, o];  z = x_t @ W_ih^T + h @ W_hh^T + (b_ih+b_hh)
# ---------------------------------------------------------------------------
def _make_fused_kernel(num_layers, T, B, H):
    def kernel(*refs):
        x_ref = refs[0]                              # (T*B, D)  bf16
        dense_w = refs[1 + 3 * num_layers][...]      # (H, O)    bf16 (pre-transposed)
        dense_b = refs[2 + 3 * num_layers][...]      # (1, O)    f32
        out_ref = refs[3 + 3 * num_layers]           # (B, O)    f32
        seq_sc = refs[4 + 3 * num_layers]            # (T*B, H)  f32 VMEM scratch

        h = None
        for l in range(num_layers):
            wih_t = refs[1 + 3 * l][...]             # (D_l, 4H) bf16 (pre-transposed)
            whh_t = refs[2 + 3 * l][...]             # (H, 4H)   bf16 (pre-transposed)
            b = refs[3 + 3 * l][...]                 # (1, 4H)   f32 (b_ih + b_hh)

            # Hoisted input projection: one big matmul for the whole sequence,
            # bias folded in (M = T*B instead of T tiny M=B matmuls).
            inp = x_ref[...] if l == 0 else seq_sc[...].astype(wih_t.dtype)
            zx = jnp.dot(inp, wih_t, preferred_element_type=jnp.float32) + b

            h = jnp.zeros((B, H), jnp.float32)
            c = jnp.zeros((B, H), jnp.float32)
            for t in range(T):                       # fully unrolled (T is tiny)
                z = zx[t * B:(t + 1) * B, :] + jnp.dot(
                    h.astype(whh_t.dtype), whh_t,
                    preferred_element_type=jnp.float32)
                i = jax.nn.sigmoid(z[:, 0 * H:1 * H])
                f = jax.nn.sigmoid(z[:, 1 * H:2 * H])
                g = jnp.tanh(z[:, 2 * H:3 * H])
                o = jax.nn.sigmoid(z[:, 3 * H:4 * H])
                c = f * c + i * g
                h = o * jnp.tanh(c)
                if l < num_layers - 1:               # only lower layers need the
                    seq_sc[t * B:(t + 1) * B, :] = h  # full sequence downstream

        # Final dense fused into the epilogue: y = ht[-1] @ W_d^T + b_d
        y = jnp.dot(h.astype(dense_w.dtype), dense_w,
                    preferred_element_type=jnp.float32) + dense_b
        out_ref[...] = y.astype(out_ref.dtype)

    return kernel


# ---------------------------------------------------------------------------
# Full EmbedLayer forward
# ---------------------------------------------------------------------------
def embed_layer_forward(params, x_ids):
    # Embedding lookup (frozen table) -- gather kept as JAX glue.
    emb = jnp.take(params["embedding"], x_ids, axis=0)          # (B, T, D) f32
    # TODO(synk): training-mode Dropout(p=0.2) omitted; inference (identity) semantics.
    B, T, D = emb.shape
    num_layers = len(params["w_ih"])
    H = params["w_hh"][0].shape[1]
    O = params["dense_w"].shape[0]

    # Time-major, flattened to (T*B, D); bf16 operands for the MXU matmuls.
    x2d = jnp.transpose(emb, (1, 0, 2)).reshape(T * B, D).astype(jnp.bfloat16)

    args = [x2d]
    in_specs = [pl.BlockSpec((T * B, D), lambda i: (0, 0))]
    for l in range(num_layers):
        wih_t = params["w_ih"][l].T.astype(jnp.bfloat16)         # (D_l, 4H)
        whh_t = params["w_hh"][l].T.astype(jnp.bfloat16)         # (H, 4H)
        b2d = params["b"][l].reshape(1, 4 * H).astype(jnp.float32)
        args += [wih_t, whh_t, b2d]
        in_specs += [
            pl.BlockSpec(wih_t.shape, lambda i: (0, 0)),
            pl.BlockSpec(whh_t.shape, lambda i: (0, 0)),
            pl.BlockSpec(b2d.shape, lambda i: (0, 0)),
        ]
    dense_wt = params["dense_w"].T.astype(jnp.bfloat16)          # (H, O)
    dense_b2d = params["dense_b"].reshape(1, O).astype(jnp.float32)
    args += [dense_wt, dense_b2d]
    in_specs += [pl.BlockSpec(dense_wt.shape, lambda i: (0, 0)),
                 pl.BlockSpec(dense_b2d.shape, lambda i: (0, 0))]

    kernel = _make_fused_kernel(num_layers, T, B, H)
    return pl.pallas_call(
        kernel,
        out_shape=jax.ShapeDtypeStruct((B, O), jnp.float32),
        grid_spec=pltpu.PrefetchScalarGridSpec(
            num_scalar_prefetch=0,
            grid=(1,),
            in_specs=in_specs,
            out_specs=pl.BlockSpec((B, O), lambda i: (0, 0)),
            scratch_shapes=[pltpu.VMEM((T * B, H), jnp.float32)],
        ),
        compiler_params=pltpu.CompilerParams(
            dimension_semantics=("arbitrary",),
            vmem_limit_bytes=32 * 1024 * 1024,
        ),
    )(*args)


# ---------------------------------------------------------------------------
# Pure-JAX f32 reference (numerical sanity check).
# ---------------------------------------------------------------------------
def reference_forward(params, x_ids):
    emb = jnp.take(params["embedding"], x_ids, axis=0)
    h_seq = jnp.transpose(emb, (1, 0, 2))
    for w_ih, w_hh, b in zip(params["w_ih"], params["w_hh"], params["b"]):
        B = h_seq.shape[1]
        H = w_hh.shape[1]

        def step(carry, x_t):
            h, c = carry
            z = x_t @ w_ih.T + h @ w_hh.T + b
            i = jax.nn.sigmoid(z[:, 0 * H:1 * H])
            f = jax.nn.sigmoid(z[:, 1 * H:2 * H])
            g = jnp.tanh(z[:, 2 * H:3 * H])
            o = jax.nn.sigmoid(z[:, 3 * H:4 * H])
            c_new = f * c + i * g
            h_new = o * jnp.tanh(c_new)
            return (h_new, c_new), h_new

        init = (jnp.zeros((B, H), jnp.float32), jnp.zeros((B, H), jnp.float32))
        _, h_seq = jax.lax.scan(step, init, h_seq)
    return h_seq[-1] @ params["dense_w"].T + params["dense_b"]


def init_params(key, vocab_size, embedding_dim, hidden_size, num_layers, out_feature):
    keys = jax.random.split(key, 3 + 4 * num_layers)
    params = {
        "embedding": 0.1 * jax.random.normal(keys[0], (vocab_size, embedding_dim),
                                             jnp.float32),
        "w_ih": [], "w_hh": [], "b": [],
        "dense_w": 0.1 * jax.random.normal(keys[1], (out_feature, hidden_size),
                                           jnp.float32),
        "dense_b": 0.1 * jax.random.normal(keys[2], (out_feature,), jnp.float32),
    }
    for l in range(num_layers):
        in_dim = embedding_dim if l == 0 else hidden_size
        k = keys[3 + 4 * l: 3 + 4 * (l + 1)]
        params["w_ih"].append(0.1 * jax.random.normal(k[0], (4 * hidden_size, in_dim),
                                                      jnp.float32))
        params["w_hh"].append(0.1 * jax.random.normal(k[1], (4 * hidden_size, hidden_size),
                                                      jnp.float32))
        b_ih = 0.1 * jax.random.normal(k[2], (4 * hidden_size,), jnp.float32)
        b_hh = 0.1 * jax.random.normal(k[3], (4 * hidden_size,), jnp.float32)
        params["b"].append(b_ih + b_hh)
    return params


if __name__ == "__main__":
    VOCAB, EMB_DIM, HIDDEN, NUM_LAYERS, OUT_FEAT = 20, 16, 32, 2, 8
    B, T = 2, 8

    key = jax.random.PRNGKey(0)
    k_param, k_ids = jax.random.split(key)
    params = init_params(k_param, VOCAB, EMB_DIM, HIDDEN, NUM_LAYERS, OUT_FEAT)
    x_ids = jax.random.randint(k_ids, (B, T), 0, VOCAB, dtype=jnp.int32)

    y = embed_layer_forward(params, x_ids)
    y = jax.block_until_ready(y)
    assert y.shape == (B, OUT_FEAT) and y.dtype == jnp.float32

    y_ref = jax.block_until_ready(reference_forward(params, x_ids))
    assert jnp.allclose(y, y_ref, rtol=5e-2, atol=5e-2)

    print("KERNEL_OK")
</pallas_src>

<mosaic_0001>
module attributes {stable_mosaic.version = 11 : i64} {
  func.func @kernel(%arg0: i32, %arg1: memref<16x16xbf16, #tpu.memory_space<vmem>>, %arg2: memref<16x128xbf16, #tpu.memory_space<vmem>>, %arg3: memref<32x128xbf16, #tpu.memory_space<vmem>>, %arg4: memref<1x128xf32, #tpu.memory_space<vmem>>, %arg5: memref<32x128xbf16, #tpu.memory_space<vmem>>, %arg6: memref<32x128xbf16, #tpu.memory_space<vmem>>, %arg7: memref<1x128xf32, #tpu.memory_space<vmem>>, %arg8: memref<32x8xbf16, #tpu.memory_space<vmem>>, %arg9: memref<1x8xf32, #tpu.memory_space<vmem>>, %arg10: memref<2x8xf32, #tpu.memory_space<vmem>>, %arg11: memref<16x32xf32, #tpu.memory_space<vmem>>) attributes {dimension_semantics = [#tpu.dimension_semantics<arbitrary>], iteration_bounds = array<i64: 1>, scalar_prefetch = 0 : i64, scratch_operands = 1 : i64, tpu.core_type = #tpu.core_type<tc>, window_params = [{pipeline_mode = #tpu.pipeline_mode<synchronous>, transform_indices = @transform_0, window_bounds = array<i64: 16, 16>}, {pipeline_mode = #tpu.pipeline_mode<synchronous>, transform_indices = @transform_1, window_bounds = array<i64: 16, 128>}, {pipeline_mode = #tpu.pipeline_mode<synchronous>, transform_indices = @transform_2, window_bounds = array<i64: 32, 128>}, {pipeline_mode = #tpu.pipeline_mode<synchronous>, transform_indices = @transform_3, window_bounds = array<i64: 1, 128>}, {pipeline_mode = #tpu.pipeline_mode<synchronous>, transform_indices = @transform_4, window_bounds = array<i64: 32, 128>}, {pipeline_mode = #tpu.pipeline_mode<synchronous>, transform_indices = @transform_5, window_bounds = array<i64: 32, 128>}, {pipeline_mode = #tpu.pipeline_mode<synchronous>, transform_indices = @transform_6, window_bounds = array<i64: 1, 128>}, {pipeline_mode = #tpu.pipeline_mode<synchronous>, transform_indices = @transform_7, window_bounds = array<i64: 32, 8>}, {pipeline_mode = #tpu.pipeline_mode<synchronous>, transform_indices = @transform_8, window_bounds = array<i64: 1, 8>}, {pipeline_mode = #tpu.pipeline_mode<synchronous>, transform_indices = @transform_9, window_bounds = array<i64: 2, 8>}]} {
    %c0 = arith.constant 0 : index
    %c0_0 = arith.constant 0 : index
    %0 = vector.load %arg8[%c0, %c0_0] : memref<32x8xbf16, #tpu.memory_space<vmem>>, vector<32x8xbf16>
    %c0_1 = arith.constant 0 : index
    %c0_2 = arith.constant 0 : index
    %1 = vector.load %arg9[%c0_1, %c0_2] : memref<1x8xf32, #tpu.memory_space<vmem>>, vector<1x8xf32>
    %c0_3 = arith.constant 0 : index
    %c0_4 = arith.constant 0 : index
    %2 = vector.load %arg2[%c0_3, %c0_4] : memref<16x128xbf16, #tpu.memory_space<vmem>>, vector<16x128xbf16>
    %c0_5 = arith.constant 0 : index
    %c0_6 = arith.constant 0 : index
    %3 = vector.load %arg3[%c0_5, %c0_6] : memref<32x128xbf16, #tpu.memory_space<vmem>>, vector<32x128xbf16>
    %c0_7 = arith.constant 0 : index
    %c0_8 = arith.constant 0 : index
    %4 = vector.load %arg4[%c0_7, %c0_8] : memref<1x128xf32, #tpu.memory_space<vmem>>, vector<1x128xf32>
    %c0_9 = arith.constant 0 : index
    %c0_10 = arith.constant 0 : index
    %5 = vector.load %arg1[%c0_9, %c0_10] : memref<16x16xbf16, #tpu.memory_space<vmem>>, vector<16x16xbf16>
    %cst = arith.constant dense<0.000000e+00> : vector<16x128xf32>
    %6 = tpu.matmul %5, %2, %cst {dimension_numbers = #tpu.dot_dimension_numbers<[1], [0], [0], [1], [0, 0, 1, 1], [], []>} : vector<16x16xbf16>, vector<16x128xbf16>, vector<16x128xf32> -> vector<16x128xf32>
    %7 = vector.broadcast %4 : vector<1x128xf32> to vector<16x128xf32>
    %8 = arith.addf %6, %7 : vector<16x128xf32>
    %cst_11 = arith.constant 0.000000e+00 : f32
    %9 = vector.broadcast %cst_11 : f32 to vector<2x32xf32>
    %cst_12 = arith.constant 0.000000e+00 : f32
    %10 = vector.broadcast %cst_12 : f32 to vector<2x32xf32>
    %11 = vector.extract_strided_slice %8 {offsets = [0, 0], sizes = [2, 128], strides = [1, 1]} : vector<16x128xf32> to vector<2x128xf32>
    %12 = arith.truncf %9 : vector<2x32xf32> to vector<2x32xbf16>
    %cst_13 = arith.constant dense<0.000000e+00> : vector<2x128xf32>
    %13 = tpu.matmul %12, %3, %cst_13 {dimension_numbers = #tpu.dot_dimension_numbers<[1], [0], [0], [1], [0, 0, 1, 1], [], []>} : vector<2x32xbf16>, vector<32x128xbf16>, vector<2x128xf32> -> vector<2x128xf32>
    %14 = arith.addf %11, %13 : vector<2x128xf32>
    %15 = vector.extract_strided_slice %14 {offsets = [0, 0], sizes = [2, 32], strides = [1, 1]} : vector<2x128xf32> to vector<2x32xf32>
    %16 = arith.negf %15 : vector<2x32xf32>
    %17 = math.exp %16 : vector<2x32xf32>
    %cst_14 = arith.constant 1.000000e+00 : f32
    %18 = vector.broadcast %cst_14 : f32 to vector<2x32xf32>
    %19 = arith.addf %18, %17 : vector<2x32xf32>
    %20 = arith.divf %18, %19 : vector<2x32xf32>
    %21 = vector.extract_strided_slice %14 {offsets = [0, 32], sizes = [2, 32], strides = [1, 1]} : vector<2x128xf32> to vector<2x32xf32>
    %22 = arith.negf %21 : vector<2x32xf32>
    %23 = math.exp %22 : vector<2x32xf32>
    %cst_15 = arith.constant 1.000000e+00 : f32
    %24 = vector.broadcast %cst_15 : f32 to vector<2x32xf32>
    %25 = arith.addf %24, %23 : vector<2x32xf32>
    %26 = arith.divf %24, %25 : vector<2x32xf32>
    %27 = vector.extract_strided_slice %14 {offsets = [0, 64], sizes = [2, 32], strides = [1, 1]} : vector<2x128xf32> to vector<2x32xf32>
    %28 = math.tanh %27 : vector<2x32xf32>
    %29 = vector.extract_strided_slice %14 {offsets = [0, 96], sizes = [2, 32], strides = [1, 1]} : vector<2x128xf32> to vector<2x32xf32>
    %30 = arith.negf %29 : vector<2x32xf32>
    %31 = math.exp %30 : vector<2x32xf32>
    %cst_16 = arith.constant 1.000000e+00 : f32
    %32 = vector.broadcast %cst_16 : f32 to vector<2x32xf32>
    %33 = arith.addf %32, %31 : vector<2x32xf32>
    %34 = arith.divf %32, %33 : vector<2x32xf32>
    %35 = arith.mulf %26, %10 : vector<2x32xf32>
    %36 = arith.mulf %20, %28 : vector<2x32xf32>
    %37 = arith.addf %35, %36 : vector<2x32xf32>
    %38 = math.tanh %37 : vector<2x32xf32>
    %39 = arith.mulf %34, %38 : vector<2x32xf32>
    %c0_17 = arith.constant 0 : index
    %c0_18 = arith.constant 0 : index
    %40 = vector.load %arg11[%c0_17, %c0_18] : memref<16x32xf32, #tpu.memory_space<vmem>>, vector<2x32xf32>
    tpu.vector_store %arg11[%c0_17, %c0_18], %39 {strides = array<i32>} : memref<16x32xf32, #tpu.memory_space<vmem>>, vector<2x32xf32>,
    %41 = vector.extract_strided_slice %8 {offsets = [2, 0], sizes = [2, 128], strides = [1, 1]} : vector<16x128xf32> to vector<2x128xf32>
    %42 = arith.truncf %39 : vector<2x32xf32> to vector<2x32xbf16>
    %cst_19 = arith.constant dense<0.000000e+00> : vector<2x128xf32>
    %43 = tpu.matmul %42, %3, %cst_19 {dimension_numbers = #tpu.dot_dimension_numbers<[1], [0], [0], [1], [0, 0, 1, 1], [], []>} : vector<2x32xbf16>, vector<32x128xbf16>, vector<2x128xf32> -> vector<2x128xf32>
    %44 = arith.addf %41, %43 : vector<2x128xf32>
    %45 = vector.extract_strided_slice %44 {offsets = [0, 0], sizes = [2, 32], strides = [1, 1]} : vector<2x128xf32> to vector<2x32xf32>
    %46 = arith.negf %45 : vector<2x32xf32>
    %47 = math.exp %46 : vector<2x32xf32>
    %cst_20 = arith.constant 1.000000e+00 : f32
    %48 = vector.broadcast %cst_20 : f32 to vector<2x32xf32>
    %49 = arith.addf %48, %47 : vector<2x32xf32>
    %50 = arith.divf %48, %49 : vector<2x32xf32>
    %51 = vector.extract_strided_slice %44 {offsets = [0, 32], sizes = [2, 32], strides = [1, 1]} : vector<2x128xf32> to vector<2x32xf32>
    %52 = arith.negf %51 : vector<2x32xf32>
    %53 = math.exp %52 : vector<2x32xf32>
    %cst_21 = arith.constant 1.000000e+00 : f32
    %54 = vector.broadcast %cst_21 : f32 to vector<2x32xf32>
    %55 = arith.addf %54, %53 : vector<2x32xf32>
    %56 = arith.divf %54, %55 : vector<2x32xf32>
    %57 = vector.extract_strided_slice %44 {offsets = [0, 64], sizes = [2, 32], strides = [1, 1]} : vector<2x128xf32> to vector<2x32xf32>
    %58 = math.tanh %57 : vector<2x32xf32>
    %59 = vector.extract_strided_slice %44 {offsets = [0, 96], sizes = [2, 32], strides = [1, 1]} : vector<2x128xf32> to vector<2x32xf32>
    %60 = arith.negf %59 : vector<2x32xf32>
    %61 = math.exp %60 : vector<2x32xf32>
    %cst_22 = arith.constant 1.000000e+00 : f32
    %62 = vector.broadcast %cst_22 : f32 to vector<2x32xf32>
    %63 = arith.addf %62, %61 : vector<2x32xf32>
    %64 = arith.divf %62, %63 : vector<2x32xf32>
    %65 = arith.mulf %56, %37 : vector<2x32xf32>
    %66 = arith.mulf %50, %58 : vector<2x32xf32>
    %67 = arith.addf %65, %66 : vector<2x32xf32>
    %68 = math.tanh %67 : vector<2x32xf32>
    %69 = arith.mulf %64, %68 : vector<2x32xf32>
    %c2 = arith.constant 2 : index
    %c0_23 = arith.constant 0 : index
    %70 = vector.load %arg11[%c2, %c0_23] : memref<16x32xf32, #tpu.memory_space<vmem>>, vector<2x32xf32>
    tpu.vector_store %arg11[%c2, %c0_23], %69 {strides = array<i32>} : memref<16x32xf32, #tpu.memory_space<vmem>>, vector<2x32xf32>,
    %71 = vector.extract_strided_slice %8 {offsets = [4, 0], sizes = [2, 128], strides = [1, 1]} : vector<16x128xf32> to vector<2x128xf32>
    %72 = arith.truncf %69 : vector<2x32xf32> to vector<2x32xbf16>
    %cst_24 = arith.constant dense<0.000000e+00> : vector<2x128xf32>
    %73 = tpu.matmul %72, %3, %cst_24 {dimension_numbers = #tpu.dot_dimension_numbers<[1], [0], [0], [1], [0, 0, 1, 1], [], []>} : vector<2x32xbf16>, vector<32x128xbf16>, vector<2x128xf32> -> vector<2x128xf32>
    %74 = arith.addf %71, %73 : vector<2x128xf32>
    %75 = vector.extract_strided_slice %74 {offsets = [0, 0], sizes = [2, 32], strides = [1, 1]} : vector<2x128xf32> to vector<2x32xf32>
    %76 = arith.negf %75 : vector<2x32xf32>
    %77 = math.exp %76 : vector<2x32xf32>
    %cst_25 = arith.constant 1.000000e+00 : f32
    %78 = vector.broadcast %cst_25 : f32 to vector<2x32xf32>
    %79 = arith.addf %78, %77 : vector<2x32xf32>
    %80 = arith.divf %78, %79 : vector<2x32xf32>
    %81 = vector.extract_strided_slice %74 {offsets = [0, 32], sizes = [2, 32], strides = [1, 1]} : vector<2x128xf32> to vector<2x32xf32>
    %82 = arith.negf %81 : vector<2x32xf32>
    %83 = math.exp %82 : vector<2x32xf32>
    %cst_26 = arith.constant 1.000000e+00 : f32
    %84 = vector.broadcast %cst_26 : f32 to vector<2x32xf32>
    %85 = arith.addf %84, %83 : vector<2x32xf32>
    %86 = arith.divf %84, %85 : vector<2x32xf32>
    %87 = vector.extract_strided_slice %74 {offsets = [0, 64], sizes = [2, 32], strides = [1, 1]} : vector<2x128xf32> to vector<2x32xf32>
    %88 = math.tanh %87 : vector<2x32xf32>
    %89 = vector.extract_strided_slice %74 {offsets = [0, 96], sizes = [2, 32], strides = [1, 1]} : vector<2x128xf32> to vector<2x32xf32>
    %90 = arith.negf %89 : vector<2x32xf32>
    %91 = math.exp %90 : vector<2x32xf32>
    %cst_27 = arith.constant 1.000000e+00 : f32
    %92 = vector.broadcast %cst_27 : f32 to vector<2x32xf32>
    %93 = arith.addf %92, %91 : vector<2x32xf32>
    %94 = arith.divf %92, %93 : vector<2x32xf32>
    %95 = arith.mulf %86, %67 : vector<2x32xf32>
    %96 = arith.mulf %80, %88 : vector<2x32xf32>
    %97 = arith.addf %95, %96 : vector<2x32xf32>
    %98 = math.tanh %97 : vector<2x32xf32>
    %99 = arith.mulf %94, %98 : vector<2x32xf32>
    %c4 = arith.constant 4 : index
    %c0_28 = arith.constant 0 : index
    %100 = vector.load %arg11[%c4, %c0_28] : memref<16x32xf32, #tpu.memory_space<vmem>>, vector<2x32xf32>
    tpu.vector_store %arg11[%c4, %c0_28], %99 {strides = array<i32>} : memref<16x32xf32, #tpu.memory_space<vmem>>, vector<2x32xf32>,
    %101 = vector.extract_strided_slice %8 {offsets = [6, 0], sizes = [2, 128], strides = [1, 1]} : vector<16x128xf32> to vector<2x128xf32>
    %102 = arith.truncf %99 : vector<2x32xf32> to vector<2x32xbf16>
    %cst_29 = arith.constant dense<0.000000e+00> : vector<2x128xf32>
    %103 = tpu.matmul %102, %3, %cst_29 {dimension_numbers = #tpu.dot_dimension_numbers<[1], [0], [0], [1], [0, 0, 1, 1], [], []>} : vector<2x32xbf16>, vector<32x128xbf16>, vector<2x128xf32> -> vector<2x128xf32>
    %104 = arith.addf %101, %103 : vector<2x128xf32>
    %105 = vector.extract_strided_slice %104 {offsets = [0, 0], sizes = [2, 32], strides = [1, 1]} : vector<2x128xf32> to vector<2x32xf32>
    %106 = arith.negf %105 : vector<2x32xf32>
    %107 = math.exp %106 : vector<2x32xf32>
    %cst_30 = arith.constant 1.000000e+00 : f32
    %108 = vector.broadcast %cst_30 : f32 to vector<2x32xf32>
    %109 = arith.addf %108, %107 : vector<2x32xf32>
    %110 = arith.divf %108, %109 : vector<2x32xf32>
    %111 = vector.extract_strided_slice %104 {offsets = [0, 32], sizes = [2, 32], strides = [1, 1]} : vector<2x128xf32> to vector<2x32xf32>
    %112 = arith.negf %111 : vector<2x32xf32>
    %113 = math.exp %112 : vector<2x32xf32>
    %cst_31 = arith.constant 1.000000e+00 : f32
    %114 = vector.broadcast %cst_31 : f32 to vector<2x32xf32>
    %115 = arith.addf %114, %113 : vector<2x32xf32>
    %116 = arith.divf %114, %115 : vector<2x32xf32>
    %117 = vector.extract_strided_slice %104 {offsets = [0, 64], sizes = [2, 32], strides = [1, 1]} : vector<2x128xf32> to vector<2x32xf32>
    %118 = math.tanh %117 : vector<2x32xf32>
    %119 = vector.extract_strided_slice %104 {offsets = [0, 96], sizes = [2, 32], strides = [1, 1]} : vector<2x128xf32> to vector<2x32xf32>
    %120 = arith.negf %119 : vector<2x32xf32>
    %121 = math.exp %120 : vector<2x32xf32>
    %cst_32 = arith.constant 1.000000e+00 : f32
    %122 = vector.broadcast %cst_32 : f32 to vector<2x32xf32>
    %123 = arith.addf %122, %121 : vector<2x32xf32>
    %124 = arith.divf %122, %123 : vector<2x32xf32>
    %125 = arith.mulf %116, %97 : vector<2x32xf32>
    %126 = arith.mulf %110, %118 : vector<2x32xf32>
    %127 = arith.addf %125, %126 : vector<2x32xf32>
    %128 = math.tanh %127 : vector<2x32xf32>
    %129 = arith.mulf %124, %128 : vector<2x32xf32>
    %c6 = arith.constant 6 : index
    %c0_33 = arith.constant 0 : index
    %130 = vector.load %arg11[%c6, %c0_33] : memref<16x32xf32, #tpu.memory_space<vmem>>, vector<2x32xf32>
    tpu.vector_store %arg11[%c6, %c0_33], %129 {strides = array<i32>} : memref<16x32xf32, #tpu.memory_space<vmem>>, vector<2x32xf32>,
    %131 = vector.extract_strided_slice %8 {offsets = [8, 0], sizes = [2, 128], strides = [1, 1]} : vector<16x128xf32> to vector<2x128xf32>
    %132 = arith.truncf %129 : vector<2x32xf32> to vector<2x32xbf16>
    %cst_34 = arith.constant dense<0.000000e+00> : vector<2x128xf32>
    %133 = tpu.matmul %132, %3, %cst_34 {dimension_numbers = #tpu.dot_dimension_numbers<[1], [0], [0], [1], [0, 0, 1, 1], [], []>} : vector<2x32xbf16>, vector<32x128xbf16>, vector<2x128xf32> -> vector<2x128xf32>
    %134 = arith.addf %131, %133 : vector<2x128xf32>
    %135 = vector.extract_strided_slice %134 {offsets = [0, 0], sizes = [2, 32], strides = [1, 1]} : vector<2x128xf32> to vector<2x32xf32>
    %136 = arith.negf %135 : vector<2x32xf32>
    %137 = math.exp %136 : vector<2x32xf32>
    %cst_35 = arith.constant 1.000000e+00 : f32
    %138 = vector.broadcast %cst_35 : f32 to vector<2x32xf32>
    %139 = arith.addf %138, %137 : vector<2x32xf32>
    %140 = arith.divf %138, %139 : vector<2x32xf32>
    %141 = vector.extract_strided_slice %134 {offsets = [0, 32], sizes = [2, 32], strides = [1, 1]} : vector<2x128xf32> to vector<2x32xf32>
    %142 = arith.negf %141 : vector<2x32xf32>
    %143 = math.exp %142 : vector<2x32xf32>
    %cst_36 = arith.constant 1.000000e+00 : f32
    %144 = vector.broadcast %cst_36 : f32 to vector<2x32xf32>
    %145 = arith.addf %144, %143 : vector<2x32xf32>
    %146 = arith.divf %144, %145 : vector<2x32xf32>
    %147 = vector.extract_strided_slice %134 {offsets = [0, 64], sizes = [2, 32], strides = [1, 1]} : vector<2x128xf32> to vector<2x32xf32>
    %148 = math.tanh %147 : vector<2x32xf32>
    %149 = vector.extract_strided_slice %134 {offsets = [0, 96], sizes = [2, 32], strides = [1, 1]} : vector<2x128xf32> to vector<2x32xf32>
    %150 = arith.negf %149 : vector<2x32xf32>
    %151 = math.exp %150 : vector<2x32xf32>
    %cst_37 = arith.constant 1.000000e+00 : f32
    %152 = vector.broadcast %cst_37 : f32 to vector<2x32xf32>
    %153 = arith.addf %152, %151 : vector<2x32xf32>
    %154 = arith.divf %152, %153 : vector<2x32xf32>
    %155 = arith.mulf %146, %127 : vector<2x32xf32>
    %156 = arith.mulf %140, %148 : vector<2x32xf32>
    %157 = arith.addf %155, %156 : vector<2x32xf32>
    %158 = math.tanh %157 : vector<2x32xf32>
    %159 = arith.mulf %154, %158 : vector<2x32xf32>
    %c8 = arith.constant 8 : index
    %c0_38 = arith.constant 0 : index
    %160 = vector.load %arg11[%c8, %c0_38] : memref<16x32xf32, #tpu.memory_space<vmem>>, vector<2x32xf32>
    tpu.vector_store %arg11[%c8, %c0_38], %159 {strides = array<i32>} : memref<16x32xf32, #tpu.memory_space<vmem>>, vector<2x32xf32>,
    %161 = vector.extract_strided_slice %8 {offsets = [10, 0], sizes = [2, 128], strides = [1, 1]} : vector<16x128xf32> to vector<2x128xf32>
    %162 = arith.truncf %159 : vector<2x32xf32> to vector<2x32xbf16>
    %cst_39 = arith.constant dense<0.000000e+00> : vector<2x128xf32>
    %163 = tpu.matmul %162, %3, %cst_39 {dimension_numbers = #tpu.dot_dimension_numbers<[1], [0], [0], [1], [0, 0, 1, 1], [], []>} : vector<2x32xbf16>, vector<32x128xbf16>, vector<2x128xf32> -> vector<2x128xf32>
    %164 = arith.addf %161, %163 : vector<2x128xf32>
    %165 = vector.extract_strided_slice %164 {offsets = [0, 0], sizes = [2, 32], strides = [1, 1]} : vector<2x128xf32> to vector<2x32xf32>
    %166 = arith.negf %165 : vector<2x32xf32>
    %167 = math.exp %166 : vector<2x32xf32>
    %cst_40 = arith.constant 1.000000e+00 : f32
    %168 = vector.broadcast %cst_40 : f32 to vector<2x32xf32>
    %169 = arith.addf %168, %167 : vector<2x32xf32>
    %170 = arith.divf %168, %169 : vector<2x32xf32>
    %171 = vector.extract_strided_slice %164 {offsets = [0, 32], sizes = [2, 32], strides = [1, 1]} : vector<2x128xf32> to vector<2x32xf32>
    %172 = arith.negf %171 : vector<2x32xf32>
    %173 = math.exp %172 : vector<2x32xf32>
    %cst_41 = arith.constant 1.000000e+00 : f32
    %174 = vector.broadcast %cst_41 : f32 to vector<2x32xf32>
    %175 = arith.addf %174, %173 : vector<2x32xf32>
    %176 = arith.divf %174, %175 : vector<2x32xf32>
    %177 = vector.extract_strided_slice %164 {offsets = [0, 64], sizes = [2, 32], strides = [1, 1]} : vector<2x128xf32> to vector<2x32xf32>
    %178 = math.tanh %177 : vector<2x32xf32>
    %179 = vector.extract_strided_slice %164 {offsets = [0, 96], sizes = [2, 32], strides = [1, 1]} : vector<2x128xf32> to vector<2x32xf32>
    %180 = arith.negf %179 : vector<2x32xf32>
    %181 = math.exp %180 : vector<2x32xf32>
    %cst_42 = arith.constant 1.000000e+00 : f32
    %182 = vector.broadcast %cst_42 : f32 to vector<2x32xf32>
    %183 = arith.addf %182, %181 : vector<2x32xf32>
    %184 = arith.divf %182, %183 : vector<2x32xf32>
    %185 = arith.mulf %176, %157 : vector<2x32xf32>
    %186 = arith.mulf %170, %178 : vector<2x32xf32>
    %187 = arith.addf %185, %186 : vector<2x32xf32>
    %188 = math.tanh %187 : vector<2x32xf32>
    %189 = arith.mulf %184, %188 : vector<2x32xf32>
    %c10 = arith.constant 10 : index
    %c0_43 = arith.constant 0 : index
    %190 = vector.load %arg11[%c10, %c0_43] : memref<16x32xf32, #tpu.memory_space<vmem>>, vector<2x32xf32>
    tpu.vector_store %arg11[%c10, %c0_43], %189 {strides = array<i32>} : memref<16x32xf32, #tpu.memory_space<vmem>>, vector<2x32xf32>,
    %191 = vector.extract_strided_slice %8 {offsets = [12, 0], sizes = [2, 128], strides = [1, 1]} : vector<16x128xf32> to vector<2x128xf32>
    %192 = arith.truncf %189 : vector<2x32xf32> to vector<2x32xbf16>
    %cst_44 = arith.constant dense<0.000000e+00> : vector<2x128xf32>
    %193 = tpu.matmul %192, %3, %cst_44 {dimension_numbers = #tpu.dot_dimension_numbers<[1], [0], [0], [1], [0, 0, 1, 1], [], []>} : vector<2x32xbf16>, vector<32x128xbf16>, vector<2x128xf32> -> vector<2x128xf32>
    %194 = arith.addf %191, %193 : vector<2x128xf32>
    %195 = vector.extract_strided_slice %194 {offsets = [0, 0], sizes = [2, 32], strides = [1, 1]} : vector<2x128xf32> to vector<2x32xf32>
    %196 = arith.negf %195 : vector<2x32xf32>
    %197 = math.exp %196 : vector<2x32xf32>
    %cst_45 = arith.constant 1.000000e+00 : f32
    %198 = vector.broadcast %cst_45 : f32 to vector<2x32xf32>
    %199 = arith.addf %198, %197 : vector<2x32xf32>
    %200 = arith.divf %198, %199 : vector<2x32xf32>
    %201 = vector.extract_strided_slice %194 {offsets = [0, 32], sizes = [2, 32], strides = [1, 1]} : vector<2x128xf32> to vector<2x32xf32>
    %202 = arith.negf %201 : vector<2x32xf32>
    %203 = math.exp %202 : vector<2x32xf32>
    %cst_46 = arith.constant 1.000000e+00 : f32
    %204 = vector.broadcast %cst_46 : f32 to vector<2x32xf32>
    %205 = arith.addf %204, %203 : vector<2x32xf32>
    %206 = arith.divf %204, %205 : vector<2x32xf32>
    %207 = vector.extract_strided_slice %194 {offsets = [0, 64], sizes = [2, 32], strides = [1, 1]} : vector<2x128xf32> to vector<2x32xf32>
    %208 = math.tanh %207 : vector<2x32xf32>
    %209 = vector.extract_strided_slice %194 {offsets = [0, 96], sizes = [2, 32], strides = [1, 1]} : vector<2x128xf32> to vector<2x32xf32>
    %210 = arith.negf %209 : vector<2x32xf32>
    %211 = math.exp %210 : vector<2x32xf32>
    %cst_47 = arith.constant 1.000000e+00 : f32
    %212 = vector.broadcast %cst_47 : f32 to vector<2x32xf32>
    %213 = arith.addf %212, %211 : vector<2x32xf32>
    %214 = arith.divf %212, %213 : vector<2x32xf32>
    %215 = arith.mulf %206, %187 : vector<2x32xf32>
    %216 = arith.mulf %200, %208 : vector<2x32xf32>
    %217 = arith.addf %215, %216 : vector<2x32xf32>
    %218 = math.tanh %217 : vector<2x32xf32>
    %219 = arith.mulf %214, %218 : vector<2x32xf32>
    %c12 = arith.constant 12 : index
    %c0_48 = arith.constant 0 : index
    %220 = vector.load %arg11[%c12, %c0_48] : memref<16x32xf32, #tpu.memory_space<vmem>>, vector<2x32xf32>
    tpu.vector_store %arg11[%c12, %c0_48], %219 {strides = array<i32>} : memref<16x32xf32, #tpu.memory_space<vmem>>, vector<2x32xf32>,
    %221 = vector.extract_strided_slice %8 {offsets = [14, 0], sizes = [2, 128], strides = [1, 1]} : vector<16x128xf32> to vector<2x128xf32>
    %222 = arith.truncf %219 : vector<2x32xf32> to vector<2x32xbf16>
    %cst_49 = arith.constant dense<0.000000e+00> : vector<2x128xf32>
    %223 = tpu.matmul %222, %3, %cst_49 {dimension_numbers = #tpu.dot_dimension_numbers<[1], [0], [0], [1], [0, 0, 1, 1], [], []>} : vector<2x32xbf16>, vector<32x128xbf16>, vector<2x128xf32> -> vector<2x128xf32>
    %224 = arith.addf %221, %223 : vector<2x128xf32>
    %225 = vector.extract_strided_slice %224 {offsets = [0, 0], sizes = [2, 32], strides = [1, 1]} : vector<2x128xf32> to vector<2x32xf32>
    %226 = arith.negf %225 : vector<2x32xf32>
    %227 = math.exp %226 : vector<2x32xf32>
    %cst_50 = arith.constant 1.000000e+00 : f32
    %228 = vector.broadcast %cst_50 : f32 to vector<2x32xf32>
    %229 = arith.addf %228, %227 : vector<2x32xf32>
    %230 = arith.divf %228, %229 : vector<2x32xf32>
    %231 = vector.extract_strided_slice %224 {offsets = [0, 32], sizes = [2, 32], strides = [1, 1]} : vector<2x128xf32> to vector<2x32xf32>
    %232 = arith.negf %231 : vector<2x32xf32>
    %233 = math.exp %232 : vector<2x32xf32>
    %cst_51 = arith.constant 1.000000e+00 : f32
    %234 = vector.broadcast %cst_51 : f32 to vector<2x32xf32>
    %235 = arith.addf %234, %233 : vector<2x32xf32>
    %236 = arith.divf %234, %235 : vector<2x32xf32>
    %237 = vector.extract_strided_slice %224 {offsets = [0, 64], sizes = [2, 32], strides = [1, 1]} : vector<2x128xf32> to vector<2x32xf32>
    %238 = math.tanh %237 : vector<2x32xf32>
    %239 = vector.extract_strided_slice %224 {offsets = [0, 96], sizes = [2, 32], strides = [1, 1]} : vector<2x128xf32> to vector<2x32xf32>
    %240 = arith.negf %239 : vector<2x32xf32>
    %241 = math.exp %240 : vector<2x32xf32>
    %cst_52 = arith.constant 1.000000e+00 : f32
    %242 = vector.broadcast %cst_52 : f32 to vector<2x32xf32>
    %243 = arith.addf %242, %241 : vector<2x32xf32>
    %244 = arith.divf %242, %243 : vector<2x32xf32>
    %245 = arith.mulf %236, %217 : vector<2x32xf32>
    %246 = arith.mulf %230, %238 : vector<2x32xf32>
    %247 = arith.addf %245, %246 : vector<2x32xf32>
    %248 = math.tanh %247 : vector<2x32xf32>
    %249 = arith.mulf %244, %248 : vector<2x32xf32>
    %c14 = arith.constant 14 : index
    %c0_53 = arith.constant 0 : index
    %250 = vector.load %arg11[%c14, %c0_53] : memref<16x32xf32, #tpu.memory_space<vmem>>, vector<2x32xf32>
    tpu.vector_store %arg11[%c14, %c0_53], %249 {strides = array<i32>} : memref<16x32xf32, #tpu.memory_space<vmem>>, vector<2x32xf32>,
    %c0_54 = arith.constant 0 : index
    %c0_55 = arith.constant 0 : index
    %251 = vector.load %arg5[%c0_54, %c0_55] : memref<32x128xbf16, #tpu.memory_space<vmem>>, vector<32x128xbf16>
    %c0_56 = arith.constant 0 : index
    %c0_57 = arith.constant 0 : index
    %252 = vector.load %arg6[%c0_56, %c0_57] : memref<32x128xbf16, #tpu.memory_space<vmem>>, vector<32x128xbf16>
    %c0_58 = arith.constant 0 : index
    %c0_59 = arith.constant 0 : index
    %253 = vector.load %arg7[%c0_58, %c0_59] : memref<1x128xf32, #tpu.memory_space<vmem>>, vector<1x128xf32>
    %c0_60 = arith.constant 0 : index
    %c0_61 = arith.constant 0 : index
    %254 = vector.load %arg11[%c0_60, %c0_61] : memref<16x32xf32, #tpu.memory_space<vmem>>, vector<16x32xf32>
    %255 = arith.truncf %254 : vector<16x32xf32> to vector<16x32xbf16>
    %cst_62 = arith.constant dense<0.000000e+00> : vector<16x128xf32>
    %256 = tpu.matmul %255, %251, %cst_62 {dimension_numbers = #tpu.dot_dimension_numbers<[1], [0], [0], [1], [0, 0, 1, 1], [], []>} : vector<16x32xbf16>, vector<32x128xbf16>, vector<16x128xf32> -> vector<16x128xf32>
    %257 = vector.broadcast %253 : vector<1x128xf32> to vector<16x128xf32>
    %258 = arith.addf %256, %257 : vector<16x128xf32>
    %cst_63 = arith.constant 0.000000e+00 : f32
    %259 = vector.broadcast %cst_63 : f32 to vector<2x32xf32>
    %cst_64 = arith.constant 0.000000e+00 : f32
    %260 = vector.broadcast %cst_64 : f32 to vector<2x32xf32>
    %261 = vector.extract_strided_slice %258 {offsets = [0, 0], sizes = [2, 128], strides = [1, 1]} : vector<16x128xf32> to vector<2x128xf32>
    %262 = arith.truncf %259 : vector<2x32xf32> to vector<2x32xbf16>
    %cst_65 = arith.constant dense<0.000000e+00> : vector<2x128xf32>
    %263 = tpu.matmul %262, %252, %cst_65 {dimension_numbers = #tpu.dot_dimension_numbers<[1], [0], [0], [1], [0, 0, 1, 1], [], []>} : vector<2x32xbf16>, vector<32x128xbf16>, vector<2x128xf32> -> vector<2x128xf32>
    %264 = arith.addf %261, %263 : vector<2x128xf32>
    %265 = vector.extract_strided_slice %264 {offsets = [0, 0], sizes = [2, 32], strides = [1, 1]} : vector<2x128xf32> to vector<2x32xf32>
    %266 = arith.negf %265 : vector<2x32xf32>
    %267 = math.exp %266 : vector<2x32xf32>
    %cst_66 = arith.constant 1.000000e+00 : f32
    %268 = vector.broadcast %cst_66 : f32 to vector<2x32xf32>
    %269 = arith.addf %268, %267 : vector<2x32xf32>
    %270 = arith.divf %268, %269 : vector<2x32xf32>
    %271 = vector.extract_strided_slice %264 {offsets = [0, 32], sizes = [2, 32], strides = [1, 1]} : vector<2x128xf32> to vector<2x32xf32>
    %272 = arith.negf %271 : vector<2x32xf32>
    %273 = math.exp %272 : vector<2x32xf32>
    %cst_67 = arith.constant 1.000000e+00 : f32
    %274 = vector.broadcast %cst_67 : f32 to vector<2x32xf32>
    %275 = arith.addf %274, %273 : vector<2x32xf32>
    %276 = arith.divf %274, %275 : vector<2x32xf32>
    %277 = vector.extract_strided_slice %264 {offsets = [0, 64], sizes = [2, 32], strides = [1, 1]} : vector<2x128xf32> to vector<2x32xf32>
    %278 = math.tanh %277 : vector<2x32xf32>
    %279 = vector.extract_strided_slice %264 {offsets = [0, 96], sizes = [2, 32], strides = [1, 1]} : vector<2x128xf32> to vector<2x32xf32>
    %280 = arith.negf %279 : vector<2x32xf32>
    %281 = math.exp %280 : vector<2x32xf32>
    %cst_68 = arith.constant 1.000000e+00 : f32
    %282 = vector.broadcast %cst_68 : f32 to vector<2x32xf32>
    %283 = arith.addf %282, %281 : vector<2x32xf32>
    %284 = arith.divf %282, %283 : vector<2x32xf32>
    %285 = arith.mulf %276, %260 : vector<2x32xf32>
    %286 = arith.mulf %270, %278 : vector<2x32xf32>
    %287 = arith.addf %285, %286 : vector<2x32xf32>
    %288 = math.tanh %287 : vector<2x32xf32>
    %289 = arith.mulf %284, %288 : vector<2x32xf32>
    %290 = vector.extract_strided_slice %258 {offsets = [2, 0], sizes = [2, 128], strides = [1, 1]} : vector<16x128xf32> to vector<2x128xf32>
    %291 = arith.truncf %289 : vector<2x32xf32> to vector<2x32xbf16>
    %cst_69 = arith.constant dense<0.000000e+00> : vector<2x128xf32>
    %292 = tpu.matmul %291, %252, %cst_69 {dimension_numbers = #tpu.dot_dimension_numbers<[1], [0], [0], [1], [0, 0, 1, 1], [], []>} : vector<2x32xbf16>, vector<32x128xbf16>, vector<2x128xf32> -> vector<2x128xf32>
    %293 = arith.addf %290, %292 : vector<2x128xf32>
    %294 = vector.extract_strided_slice %293 {offsets = [0, 0], sizes = [2, 32], strides = [1, 1]} : vector<2x128xf32> to vector<2x32xf32>
    %295 = arith.negf %294 : vector<2x32xf32>
    %296 = math.exp %295 : vector<2x32xf32>
    %cst_70 = arith.constant 1.000000e+00 : f32
    %297 = vector.broadcast %cst_70 : f32 to vector<2x32xf32>
    %298 = arith.addf %297, %296 : vector<2x32xf32>
    %299 = arith.divf %297, %298 : vector<2x32xf32>
    %300 = vector.extract_strided_slice %293 {offsets = [0, 32], sizes = [2, 32], strides = [1, 1]} : vector<2x128xf32> to vector<2x32xf32>
    %301 = arith.negf %300 : vector<2x32xf32>
    %302 = math.exp %301 : vector<2x32xf32>
    %cst_71 = arith.constant 1.000000e+00 : f32
    %303 = vector.broadcast %cst_71 : f32 to vector<2x32xf32>
    %304 = arith.addf %303, %302 : vector<2x32xf32>
    %305 = arith.divf %303, %304 : vector<2x32xf32>
    %306 = vector.extract_strided_slice %293 {offsets = [0, 64], sizes = [2, 32], strides = [1, 1]} : vector<2x128xf32> to vector<2x32xf32>
    %307 = math.tanh %306 : vector<2x32xf32>
    %308 = vector.extract_strided_slice %293 {offsets = [0, 96], sizes = [2, 32], strides = [1, 1]} : vector<2x128xf32> to vector<2x32xf32>
    %309 = arith.negf %308 : vector<2x32xf32>
    %310 = math.exp %309 : vector<2x32xf32>
    %cst_72 = arith.constant 1.000000e+00 : f32
    %311 = vector.broadcast %cst_72 : f32 to vector<2x32xf32>
    %312 = arith.addf %311, %310 : vector<2x32xf32>
    %313 = arith.divf %311, %312 : vector<2x32xf32>
    %314 = arith.mulf %305, %287 : vector<2x32xf32>
    %315 = arith.mulf %299, %307 : vector<2x32xf32>
    %316 = arith.addf %314, %315 : vector<2x32xf32>
    %317 = math.tanh %316 : vector<2x32xf32>
    %318 = arith.mulf %313, %317 : vector<2x32xf32>
    %319 = vector.extract_strided_slice %258 {offsets = [4, 0], sizes = [2, 128], strides = [1, 1]} : vector<16x128xf32> to vector<2x128xf32>
    %320 = arith.truncf %318 : vector<2x32xf32> to vector<2x32xbf16>
    %cst_73 = arith.constant dense<0.000000e+00> : vector<2x128xf32>
    %321 = tpu.matmul %320, %252, %cst_73 {dimension_numbers = #tpu.dot_dimension_numbers<[1], [0], [0], [1], [0, 0, 1, 1], [], []>} : vector<2x32xbf16>, vector<32x128xbf16>, vector<2x128xf32> -> vector<2x128xf32>
    %322 = arith.addf %319, %321 : vector<2x128xf32>
    %323 = vector.extract_strided_slice %322 {offsets = [0, 0], sizes = [2, 32], strides = [1, 1]} : vector<2x128xf32> to vector<2x32xf32>
    %324 = arith.negf %323 : vector<2x32xf32>
    %325 = math.exp %324 : vector<2x32xf32>
    %cst_74 = arith.constant 1.000000e+00 : f32
    %326 = vector.broadcast %cst_74 : f32 to vector<2x32xf32>
    %327 = arith.addf %326, %325 : vector<2x32xf32>
    %328 = arith.divf %326, %327 : vector<2x32xf32>
    %329 = vector.extract_strided_slice %322 {offsets = [0, 32], sizes = [2, 32], strides = [1, 1]} : vector<2x128xf32> to vector<2x32xf32>
    %330 = arith.negf %329 : vector<2x32xf32>
    %331 = math.exp %330 : vector<2x32xf32>
    %cst_75 = arith.constant 1.000000e+00 : f32
    %332 = vector.broadcast %cst_75 : f32 to vector<2x32xf32>
    %333 = arith.addf %332, %331 : vector<2x32xf32>
    %334 = arith.divf %332, %333 : vector<2x32xf32>
    %335 = vector.extract_strided_slice %322 {offsets = [0, 64], sizes = [2, 32], strides = [1, 1]} : vector<2x128xf32> to vector<2x32xf32>
    %336 = math.tanh %335 : vector<2x32xf32>
    %337 = vector.extract_strided_slice %322 {offsets = [0, 96], sizes = [2, 32], strides = [1, 1]} : vector<2x128xf32> to vector<2x32xf32>
    %338 = arith.negf %337 : vector<2x32xf32>
    %339 = math.exp %338 : vector<2x32xf32>
    %cst_76 = arith.constant 1.000000e+00 : f32
    %340 = vector.broadcast %cst_76 : f32 to vector<2x32xf32>
    %341 = arith.addf %340, %339 : vector<2x32xf32>
    %342 = arith.divf %340, %341 : vector<2x32xf32>
    %343 = arith.mulf %334, %316 : vector<2x32xf32>
    %344 = arith.mulf %328, %336 : vector<2x32xf32>
    %345 = arith.addf %343, %344 : vector<2x32xf32>
    %346 = math.tanh %345 : vector<2x32xf32>
    %347 = arith.mulf %342, %346 : vector<2x32xf32>
    %348 = vector.extract_strided_slice %258 {offsets = [6, 0], sizes = [2, 128], strides = [1, 1]} : vector<16x128xf32> to vector<2x128xf32>
    %349 = arith.truncf %347 : vector<2x32xf32> to vector<2x32xbf16>
    %cst_77 = arith.constant dense<0.000000e+00> : vector<2x128xf32>
    %350 = tpu.matmul %349, %252, %cst_77 {dimension_numbers = #tpu.dot_dimension_numbers<[1], [0], [0], [1], [0, 0, 1, 1], [], []>} : vector<2x32xbf16>, vector<32x128xbf16>, vector<2x128xf32> -> vector<2x128xf32>
    %351 = arith.addf %348, %350 : vector<2x128xf32>
    %352 = vector.extract_strided_slice %351 {offsets = [0, 0], sizes = [2, 32], strides = [1, 1]} : vector<2x128xf32> to vector<2x32xf32>
    %353 = arith.negf %352 : vector<2x32xf32>
    %354 = math.exp %353 : vector<2x32xf32>
    %cst_78 = arith.constant 1.000000e+00 : f32
    %355 = vector.broadcast %cst_78 : f32 to vector<2x32xf32>
    %356 = arith.addf %355, %354 : vector<2x32xf32>
    %357 = arith.divf %355, %356 : vector<2x32xf32>
    %358 = vector.extract_strided_slice %351 {offsets = [0, 32], sizes = [2, 32], strides = [1, 1]} : vector<2x128xf32> to vector<2x32xf32>
    %359 = arith.negf %358 : vector<2x32xf32>
    %360 = math.exp %359 : vector<2x32xf32>
    %cst_79 = arith.constant 1.000000e+00 : f32
    %361 = vector.broadcast %cst_79 : f32 to vector<2x32xf32>
    %362 = arith.addf %361, %360 : vector<2x32xf32>
    %363 = arith.divf %361, %362 : vector<2x32xf32>
    %364 = vector.extract_strided_slice %351 {offsets = [0, 64], sizes = [2, 32], strides = [1, 1]} : vector<2x128xf32> to vector<2x32xf32>
    %365 = math.tanh %364 : vector<2x32xf32>
    %366 = vector.extract_strided_slice %351 {offsets = [0, 96], sizes = [2, 32], strides = [1, 1]} : vector<2x128xf32> to vector<2x32xf32>
    %367 = arith.negf %366 : vector<2x32xf32>
    %368 = math.exp %367 : vector<2x32xf32>
    %cst_80 = arith.constant 1.000000e+00 : f32
    %369 = vector.broadcast %cst_80 : f32 to vector<2x32xf32>
    %370 = arith.addf %369, %368 : vector<2x32xf32>
    %371 = arith.divf %369, %370 : vector<2x32xf32>
    %372 = arith.mulf %363, %345 : vector<2x32xf32>
    %373 = arith.mulf %357, %365 : vector<2x32xf32>
    %374 = arith.addf %372, %373 : vector<2x32xf32>
    %375 = math.tanh %374 : vector<2x32xf32>
    %376 = arith.mulf %371, %375 : vector<2x32xf32>
    %377 = vector.extract_strided_slice %258 {offsets = [8, 0], sizes = [2, 128], strides = [1, 1]} : vector<16x128xf32> to vector<2x128xf32>
    %378 = arith.truncf %376 : vector<2x32xf32> to vector<2x32xbf16>
    %cst_81 = arith.constant dense<0.000000e+00> : vector<2x128xf32>
    %379 = tpu.matmul %378, %252, %cst_81 {dimension_numbers = #tpu.dot_dimension_numbers<[1], [0], [0], [1], [0, 0, 1, 1], [], []>} : vector<2x32xbf16>, vector<32x128xbf16>, vector<2x128xf32> -> vector<2x128xf32>
    %380 = arith.addf %377, %379 : vector<2x128xf32>
    %381 = vector.extract_strided_slice %380 {offsets = [0, 0], sizes = [2, 32], strides = [1, 1]} : vector<2x128xf32> to vector<2x32xf32>
    %382 = arith.negf %381 : vector<2x32xf32>
    %383 = math.exp %382 : vector<2x32xf32>
    %cst_82 = arith.constant 1.000000e+00 : f32
    %384 = vector.broadcast %cst_82 : f32 to vector<2x32xf32>
    %385 = arith.addf %384, %383 : vector<2x32xf32>
    %386 = arith.divf %384, %385 : vector<2x32xf32>
    %387 = vector.extract_strided_slice %380 {offsets = [0, 32], sizes = [2, 32], strides = [1, 1]} : vector<2x128xf32> to vector<2x32xf32>
    %388 = arith.negf %387 : vector<2x32xf32>
    %389 = math.exp %388 : vector<2x32xf32>
    %cst_83 = arith.constant 1.000000e+00 : f32
    %390 = vector.broadcast %cst_83 : f32 to vector<2x32xf32>
    %391 = arith.addf %390, %389 : vector<2x32xf32>
    %392 = arith.divf %390, %391 : vector<2x32xf32>
    %393 = vector.extract_strided_slice %380 {offsets = [0, 64], sizes = [2, 32], strides = [1, 1]} : vector<2x128xf32> to vector<2x32xf32>
    %394 = math.tanh %393 : vector<2x32xf32>
    %395 = vector.extract_strided_slice %380 {offsets = [0, 96], sizes = [2, 32], strides = [1, 1]} : vector<2x128xf32> to vector<2x32xf32>
    %396 = arith.negf %395 : vector<2x32xf32>
    %397 = math.exp %396 : vector<2x32xf32>
    %cst_84 = arith.constant 1.000000e+00 : f32
    %398 = vector.broadcast %cst_84 : f32 to vector<2x32xf32>
    %399 = arith.addf %398, %397 : vector<2x32xf32>
    %400 = arith.divf %398, %399 : vector<2x32xf32>
    %401 = arith.mulf %392, %374 : vector<2x32xf32>
    %402 = arith.mulf %386, %394 : vector<2x32xf32>
    %403 = arith.addf %401, %402 : vector<2x32xf32>
    %404 = math.tanh %403 : vector<2x32xf32>
    %405 = arith.mulf %400, %404 : vector<2x32xf32>
    %406 = vector.extract_strided_slice %258 {offsets = [10, 0], sizes = [2, 128], strides = [1, 1]} : vector<16x128xf32> to vector<2x128xf32>
    %407 = arith.truncf %405 : vector<2x32xf32> to vector<2x32xbf16>
    %cst_85 = arith.constant dense<0.000000e+00> : vector<2x128xf32>
    %408 = tpu.matmul %407, %252, %cst_85 {dimension_numbers = #tpu.dot_dimension_numbers<[1], [0], [0], [1], [0, 0, 1, 1], [], []>} : vector<2x32xbf16>, vector<32x128xbf16>, vector<2x128xf32> -> vector<2x128xf32>
    %409 = arith.addf %406, %408 : vector<2x128xf32>
    %410 = vector.extract_strided_slice %409 {offsets = [0, 0], sizes = [2, 32], strides = [1, 1]} : vector<2x128xf32> to vector<2x32xf32>
    %411 = arith.negf %410 : vector<2x32xf32>
    %412 = math.exp %411 : vector<2x32xf32>
    %cst_86 = arith.constant 1.000000e+00 : f32
    %413 = vector.broadcast %cst_86 : f32 to vector<2x32xf32>
    %414 = arith.addf %413, %412 : vector<2x32xf32>
    %415 = arith.divf %413, %414 : vector<2x32xf32>
    %416 = vector.extract_strided_slice %409 {offsets = [0, 32], sizes = [2, 32], strides = [1, 1]} : vector<2x128xf32> to vector<2x32xf32>
    %417 = arith.negf %416 : vector<2x32xf32>
    %418 = math.exp %417 : vector<2x32xf32>
    %cst_87 = arith.constant 1.000000e+00 : f32
    %419 = vector.broadcast %cst_87 : f32 to vector<2x32xf32>
    %420 = arith.addf %419, %418 : vector<2x32xf32>
    %421 = arith.divf %419, %420 : vector<2x32xf32>
    %422 = vector.extract_strided_slice %409 {offsets = [0, 64], sizes = [2, 32], strides = [1, 1]} : vector<2x128xf32> to vector<2x32xf32>
    %423 = math.tanh %422 : vector<2x32xf32>
    %424 = vector.extract_strided_slice %409 {offsets = [0, 96], sizes = [2, 32], strides = [1, 1]} : vector<2x128xf32> to vector<2x32xf32>
    %425 = arith.negf %424 : vector<2x32xf32>
    %426 = math.exp %425 : vector<2x32xf32>
    %cst_88 = arith.constant 1.000000e+00 : f32
    %427 = vector.broadcast %cst_88 : f32 to vector<2x32xf32>
    %428 = arith.addf %427, %426 : vector<2x32xf32>
    %429 = arith.divf %427, %428 : vector<2x32xf32>
    %430 = arith.mulf %421, %403 : vector<2x32xf32>
    %431 = arith.mulf %415, %423 : vector<2x32xf32>
    %432 = arith.addf %430, %431 : vector<2x32xf32>
    %433 = math.tanh %432 : vector<2x32xf32>
    %434 = arith.mulf %429, %433 : vector<2x32xf32>
    %435 = vector.extract_strided_slice %258 {offsets = [12, 0], sizes = [2, 128], strides = [1, 1]} : vector<16x128xf32> to vector<2x128xf32>
    %436 = arith.truncf %434 : vector<2x32xf32> to vector<2x32xbf16>
    %cst_89 = arith.constant dense<0.000000e+00> : vector<2x128xf32>
    %437 = tpu.matmul %436, %252, %cst_89 {dimension_numbers = #tpu.dot_dimension_numbers<[1], [0], [0], [1], [0, 0, 1, 1], [], []>} : vector<2x32xbf16>, vector<32x128xbf16>, vector<2x128xf32> -> vector<2x128xf32>
    %438 = arith.addf %435, %437 : vector<2x128xf32>
    %439 = vector.extract_strided_slice %438 {offsets = [0, 0], sizes = [2, 32], strides = [1, 1]} : vector<2x128xf32> to vector<2x32xf32>
    %440 = arith.negf %439 : vector<2x32xf32>
    %441 = math.exp %440 : vector<2x32xf32>
    %cst_90 = arith.constant 1.000000e+00 : f32
    %442 = vector.broadcast %cst_90 : f32 to vector<2x32xf32>
    %443 = arith.addf %442, %441 : vector<2x32xf32>
    %444 = arith.divf %442, %443 : vector<2x32xf32>
    %445 = vector.extract_strided_slice %438 {offsets = [0, 32], sizes = [2, 32], strides = [1, 1]} : vector<2x128xf32> to vector<2x32xf32>
    %446 = arith.negf %445 : vector<2x32xf32>
    %447 = math.exp %446 : vector<2x32xf32>
    %cst_91 = arith.constant 1.000000e+00 : f32
    %448 = vector.broadcast %cst_91 : f32 to vector<2x32xf32>
    %449 = arith.addf %448, %447 : vector<2x32xf32>
    %450 = arith.divf %448, %449 : vector<2x32xf32>
    %451 = vector.extract_strided_slice %438 {offsets = [0, 64], sizes = [2, 32], strides = [1, 1]} : vector<2x128xf32> to vector<2x32xf32>
    %452 = math.tanh %451 : vector<2x32xf32>
    %453 = vector.extract_strided_slice %438 {offsets = [0, 96], sizes = [2, 32], strides = [1, 1]} : vector<2x128xf32> to vector<2x32xf32>
    %454 = arith.negf %453 : vector<2x32xf32>
    %455 = math.exp %454 : vector<2x32xf32>
    %cst_92 = arith.constant 1.000000e+00 : f32
    %456 = vector.broadcast %cst_92 : f32 to vector<2x32xf32>
    %457 = arith.addf %456, %455 : vector<2x32xf32>
    %458 = arith.divf %456, %457 : vector<2x32xf32>
    %459 = arith.mulf %450, %432 : vector<2x32xf32>
    %460 = arith.mulf %444, %452 : vector<2x32xf32>
    %461 = arith.addf %459, %460 : vector<2x32xf32>
    %462 = math.tanh %461 : vector<2x32xf32>
    %463 = arith.mulf %458, %462 : vector<2x32xf32>
    %464 = vector.extract_strided_slice %258 {offsets = [14, 0], sizes = [2, 128], strides = [1, 1]} : vector<16x128xf32> to vector<2x128xf32>
    %465 = arith.truncf %463 : vector<2x32xf32> to vector<2x32xbf16>
    %cst_93 = arith.constant dense<0.000000e+00> : vector<2x128xf32>
    %466 = tpu.matmul %465, %252, %cst_93 {dimension_numbers = #tpu.dot_dimension_numbers<[1], [0], [0], [1], [0, 0, 1, 1], [], []>} : vector<2x32xbf16>, vector<32x128xbf16>, vector<2x128xf32> -> vector<2x128xf32>
    %467 = arith.addf %464, %466 : vector<2x128xf32>
    %468 = vector.extract_strided_slice %467 {offsets = [0, 0], sizes = [2, 32], strides = [1, 1]} : vector<2x128xf32> to vector<2x32xf32>
    %469 = arith.negf %468 : vector<2x32xf32>
    %470 = math.exp %469 : vector<2x32xf32>
    %cst_94 = arith.constant 1.000000e+00 : f32
    %471 = vector.broadcast %cst_94 : f32 to vector<2x32xf32>
    %472 = arith.addf %471, %470 : vector<2x32xf32>
    %473 = arith.divf %471, %472 : vector<2x32xf32>
    %474 = vector.extract_strided_slice %467 {offsets = [0, 32], sizes = [2, 32], strides = [1, 1]} : vector<2x128xf32> to vector<2x32xf32>
    %475 = arith.negf %474 : vector<2x32xf32>
    %476 = math.exp %475 : vector<2x32xf32>
    %cst_95 = arith.constant 1.000000e+00 : f32
    %477 = vector.broadcast %cst_95 : f32 to vector<2x32xf32>
    %478 = arith.addf %477, %476 : vector<2x32xf32>
    %479 = arith.divf %477, %478 : vector<2x32xf32>
    %480 = vector.extract_strided_slice %467 {offsets = [0, 64], sizes = [2, 32], strides = [1, 1]} : vector<2x128xf32> to vector<2x32xf32>
    %481 = math.tanh %480 : vector<2x32xf32>
    %482 = vector.extract_strided_slice %467 {offsets = [0, 96], sizes = [2, 32], strides = [1, 1]} : vector<2x128xf32> to vector<2x32xf32>
    %483 = arith.negf %482 : vector<2x32xf32>
    %484 = math.exp %483 : vector<2x32xf32>
    %cst_96 = arith.constant 1.000000e+00 : f32
    %485 = vector.broadcast %cst_96 : f32 to vector<2x32xf32>
    %486 = arith.addf %485, %484 : vector<2x32xf32>
    %487 = arith.divf %485, %486 : vector<2x32xf32>
    %488 = arith.mulf %479, %461 : vector<2x32xf32>
    %489 = arith.mulf %473, %481 : vector<2x32xf32>
    %490 = arith.addf %488, %489 : vector<2x32xf32>
    %491 = math.tanh %490 : vector<2x32xf32>
    %492 = arith.mulf %487, %491 : vector<2x32xf32>
    %493 = arith.truncf %492 : vector<2x32xf32> to vector<2x32xbf16>
    %cst_97 = arith.constant dense<0.000000e+00> : vector<2x8xf32>
    %494 = tpu.matmul %493, %0, %cst_97 {dimension_numbers = #tpu.dot_dimension_numbers<[1], [0], [0], [1], [0, 0, 1, 1], [], []>} : vector<2x32xbf16>, vector<32x8xbf16>, vector<2x8xf32> -> vector<2x8xf32>
    %495 = vector.broadcast %1 : vector<1x8xf32> to vector<2x8xf32>
    %496 = arith.addf %494, %495 : vector<2x8xf32>
    %c0_98 = arith.constant 0 : index
    %c0_99 = arith.constant 0 : index
    %497 = vector.load %arg10[%c0_98, %c0_99] : memref<2x8xf32, #tpu.memory_space<vmem>>, vector<2x8xf32>
    tpu.vector_store %arg10[%c0_98, %c0_99], %496 {strides = array<i32>} : memref<2x8xf32, #tpu.memory_space<vmem>>, vector<2x8xf32>,
    return
  }
  func.func @transform_0(%arg0: i32) -> (i32, i32) {
    %c0_i32 = arith.constant 0 : i32
    %c0_i32_0 = arith.constant 0 : i32
    %c0_i32_1 = arith.constant 0 : i32
    return %c0_i32, %c0_i32_0 : i32, i32
  }
  func.func @transform_1(%arg0: i32) -> (i32, i32) {
    %c0_i32 = arith.constant 0 : i32
    %c0_i32_0 = arith.constant 0 : i32
    %c0_i32_1 = arith.constant 0 : i32
    return %c0_i32, %c0_i32_0 : i32, i32
  }
  func.func @transform_2(%arg0: i32) -> (i32, i32) {
    %c0_i32 = arith.constant 0 : i32
    %c0_i32_0 = arith.constant 0 : i32
    %c0_i32_1 = arith.constant 0 : i32
    return %c0_i32, %c0_i32_0 : i32, i32
  }
  func.func @transform_3(%arg0: i32) -> (i32, i32) {
    %c0_i32 = arith.constant 0 : i32
    %c0_i32_0 = arith.constant 0 : i32
    %c0_i32_1 = arith.constant 0 : i32
    return %c0_i32, %c0_i32_0 : i32, i32
  }
  func.func @transform_4(%arg0: i32) -> (i32, i32) {
    %c0_i32 = arith.constant 0 : i32
    %c0_i32_0 = arith.constant 0 : i32
    %c0_i32_1 = arith.constant 0 : i32
    return %c0_i32, %c0_i32_0 : i32, i32
  }
  func.func @transform_5(%arg0: i32) -> (i32, i32) {
    %c0_i32 = arith.constant 0 : i32
    %c0_i32_0 = arith.constant 0 : i32
    %c0_i32_1 = arith.constant 0 : i32
    return %c0_i32, %c0_i32_0 : i32, i32
  }
  func.func @transform_6(%arg0: i32) -> (i32, i32) {
    %c0_i32 = arith.constant 0 : i32
    %c0_i32_0 = arith.constant 0 : i32
    %c0_i32_1 = arith.constant 0 : i32
    return %c0_i32, %c0_i32_0 : i32, i32
  }
  func.func @transform_7(%arg0: i32) -> (i32, i32) {
    %c0_i32 = arith.constant 0 : i32
    %c0_i32_0 = arith.constant 0 : i32
    %c0_i32_1 = arith.constant 0 : i32
    return %c0_i32, %c0_i32_0 : i32, i32
  }
  func.func @transform_8(%arg0: i32) -> (i32, i32) {
    %c0_i32 = arith.constant 0 : i32
    %c0_i32_0 = arith.constant 0 : i32
    %c0_i32_1 = arith.constant 0 : i32
    return %c0_i32, %c0_i32_0 : i32, i32
  }
  func.func @transform_9(%arg0: i32) -> (i32, i32) {
    %c0_i32 = arith.constant 0 : i32
    %c0_i32_0 = arith.constant 0 : i32
    %c0_i32_1 = arith.constant 0 : i32
    return %c0_i32, %c0_i32_0 : i32, i32
  }
}

</mosaic_0001>

<llo_original>
// kernel: tpu_custom_call.1
$region0: #{tpu_custom_call.1}
  #allocation0 [shape = 'u32[]', space=smem, size = 0x4, offset = 0x4, fixed_abs, tag = 'smem constant byte address 0x4 - core index']
  #allocation1 [shape = 'u32[72,128]{1,0:T(1,128)}', space=vmem, size = 0x9000, scoped, tag = 'internal scratch']
  #allocation2 [shape = 'f32[16,32]{1,0:T(8,128)}', space=vmem, size = 0x2000, scoped, tag = 'scratch operand']
  %s0 = inlined_call_operand.hbm [shape: bf16[16,16], index: 0, kind: input, shape index: {}]
  %s1 = inlined_call_operand.hbm [shape: bf16[16,128], index: 1, kind: input, shape index: {}]
  %s2 = inlined_call_operand.vmem [shape: bf16[32,128], index: 2, kind: input, shape index: {}]
  %s3 = inlined_call_operand.vmem [shape: f32[1,128], index: 3, kind: input, shape index: {}]
  %s4 = inlined_call_operand.hbm [shape: bf16[32,128], index: 4, kind: input, shape index: {}]
  %s5 = inlined_call_operand.hbm [shape: bf16[32,128], index: 5, kind: input, shape index: {}]
  %s6 = inlined_call_operand.vmem [shape: f32[1,128], index: 6, kind: input, shape index: {}]
  %s7 = inlined_call_operand.vmem [shape: bf16[32,8], index: 7, kind: input, shape index: {}]
  %s8 = inlined_call_operand.vmem [shape: f32[1,8], index: 8, kind: input, shape index: {}]
  %s9 = inlined_call_operand.hbm [shape: f32[2,8], index: 9, kind: output, shape index: {}]
  %s10 = sld [smem:[#allocation0]]
  $region62: #{tpu_custom_call.1} parent=0
    _
  %s12 = ssub.s32 1, %s10
  %s13 = scalar_select 0, %s12, %s10
  $region1: #{tpu_custom_call.1} parent=0
    #allocation3 [shape = 'u8[4096]{0}', space=vmem, size = 0x1000, scoped, tag = 'input window, operand 0, single buffered']
    #allocation4 [shape = 's32[1]{0}', space=sflag, size = 0x4, scoped, tag = 'scoped memory for tpu_custom_call.1']
    #allocation5 [shape = 's32[1]{0}', space=sflag, size = 0x4, scoped, tag = 'scoped memory for tpu_custom_call.1']
    #allocation6 [shape = 'u8[4096]{0}', space=vmem, size = 0x1000, scoped, tag = 'input window, operand 1, single buffered']
    #allocation7 [shape = 's32[1]{0}', space=sflag, size = 0x4, scoped, tag = 'scoped memory for tpu_custom_call.1']
    #allocation8 [shape = 'u8[8192]{0}', space=vmem, size = 0x2000, scoped, tag = 'input window, operand 4, single buffered']
    #allocation9 [shape = 'u8[8192]{0}', space=vmem, size = 0x2000, scoped, tag = 'input window, operand 5, single buffered']
    #allocation10 [shape = 's32[1]{0}', space=sflag, size = 0x4, scoped, tag = 'scoped memory for tpu_custom_call.1']
    #allocation11 [shape = 'u8[1024]{0}', space=vmem, size = 0x400, scoped, tag = 'output window, operand 0, single buffered']
    %14 = vsyncpa [#allocation4], 0
    %15 = vsyncpa [#allocation7], 0
    %16 = vsyncpa [#allocation10], 0
    %17 = vsyncpa [#allocation5], 0
    // Predicated region
    $region2: #{tpu_custom_call.1} parent=1 // pred_check
      _
    $region3: #{tpu_custom_call.1} parent=1 // pred_check_branch
      %19 = sbr.rel (0) target = $region5
    $region4: #{tpu_custom_call.1} parent=1 // pred_region
      %21 = vsyncadd [#allocation4], 0
      %s22 = sshll.u32 %s0, 4
      %s23 = int_to_ptr.hbm [resolvable:$true] %s22
      %s24 = sshll.u32 [#allocation3], 4
      %s25 = int_to_ptr.vmem [resolvable:$true] %s24
      %30 = dma.hbm_to_vmem [thread:$0]  %s23, 128, %s25, [#allocation4], 64, 64, 4
    $region5: #{tpu_custom_call.1} parent=1 // pred_fallthru
      _
    // Predicated region
    $region6: #{tpu_custom_call.1} parent=1 // pred_check
      _
    $region7: #{tpu_custom_call.1} parent=1 // pred_check_branch
      %32 = sbr.rel (0) target = $region9
    $region8: #{tpu_custom_call.1} parent=1 // pred_region
      %34 = vsyncadd [#allocation7], 0
      %s35 = sshll.u32 %s1, 4
      %s36 = int_to_ptr.hbm [resolvable:$true] %s35
      %s37 = sshll.u32 [#allocation6], 4
      %s38 = int_to_ptr.vmem [resolvable:$true] %s37
      %43 = dma.hbm_to_vmem [thread:$0]  %s36, 128, %s38, [#allocation7], 64, 64, 4
    $region9: #{tpu_custom_call.1} parent=1 // pred_fallthru
      _
    // Predicated region
    $region10: #{tpu_custom_call.1} parent=1 // pred_check
      _
    $region11: #{tpu_custom_call.1} parent=1 // pred_check_branch
      %45 = sbr.rel (0) target = $region13
    $region12: #{tpu_custom_call.1} parent=1 // pred_region
      _
    $region13: #{tpu_custom_call.1} parent=1 // pred_fallthru
      _
    // Predicated region
    $region14: #{tpu_custom_call.1} parent=1 // pred_check
      _
    $region15: #{tpu_custom_call.1} parent=1 // pred_check_branch
      %47 = sbr.rel (0) target = $region17
    $region16: #{tpu_custom_call.1} parent=1 // pred_region
      _
    $region17: #{tpu_custom_call.1} parent=1 // pred_fallthru
      _
    // Predicated region
    $region18: #{tpu_custom_call.1} parent=1 // pred_check
      _
    $region19: #{tpu_custom_call.1} parent=1 // pred_check_branch
      %49 = sbr.rel (0) target = $region21
    $region20: #{tpu_custom_call.1} parent=1 // pred_region
      %51 = vsyncadd [#allocation7], 0
      %s52 = sshll.u32 %s4, 4
      %s53 = int_to_ptr.hbm [resolvable:$true] %s52
      %s54 = sshll.u32 [#allocation8], 4
      %s55 = int_to_ptr.vmem [resolvable:$true] %s54
      %60 = dma.hbm_to_vmem [thread:$0]  %s53, 256, %s55, [#allocation7], 64, 64, 4
    $region21: #{tpu_custom_call.1} parent=1 // pred_fallthru
      _
    // Predicated region
    $region22: #{tpu_custom_call.1} parent=1 // pred_check
      _
    $region23: #{tpu_custom_call.1} parent=1 // pred_check_branch
      %62 = sbr.rel (0) target = $region25
    $region24: #{tpu_custom_call.1} parent=1 // pred_region
      %64 = vsyncadd [#allocation10], 0
      %s65 = sshll.u32 %s5, 4
      %s66 = int_to_ptr.hbm [resolvable:$true] %s65
      %s67 = sshll.u32 [#allocation9], 4
      %s68 = int_to_ptr.vmem [resolvable:$true] %s67
      %73 = dma.hbm_to_vmem [thread:$0]  %s66, 256, %s68, [#allocation10], 64, 64, 4
    $region25: #{tpu_custom_call.1} parent=1 // pred_fallthru
      _
    // Predicated region
    $region26: #{tpu_custom_call.1} parent=1 // pred_check
      _
    $region27: #{tpu_custom_call.1} parent=1 // pred_check_branch
      %75 = sbr.rel (0) target = $region29
    $region28: #{tpu_custom_call.1} parent=1 // pred_region
      _
    $region29: #{tpu_custom_call.1} parent=1 // pred_fallthru
      _
    // Predicated region
    $region30: #{tpu_custom_call.1} parent=1 // pred_check
      _
    $region31: #{tpu_custom_call.1} parent=1 // pred_check_branch
      %77 = sbr.rel (0) target = $region33
    $region32: #{tpu_custom_call.1} parent=1 // pred_region
      _
    $region33: #{tpu_custom_call.1} parent=1 // pred_fallthru
      _
    // Predicated region
    $region34: #{tpu_custom_call.1} parent=1 // pred_check
      _
    $region35: #{tpu_custom_call.1} parent=1 // pred_check_branch
      %79 = sbr.rel (0) target = $region37
    $region36: #{tpu_custom_call.1} parent=1 // pred_region
      _
    $region37: #{tpu_custom_call.1} parent=1 // pred_fallthru
      _
    // Predicated region
    $region38: #{tpu_custom_call.1} parent=1 // pred_check
      _
    $region39: #{tpu_custom_call.1} parent=1 // pred_check_branch
      %81 = sbr.rel (0) target = $region41
    $region40: #{tpu_custom_call.1} parent=1 // pred_region
      %83 = dma.done [#allocation4], 128
    $region41: #{tpu_custom_call.1} parent=1 // pred_fallthru
      _
    // Predicated region
    $region42: #{tpu_custom_call.1} parent=1 // pred_check
      _
    $region43: #{tpu_custom_call.1} parent=1 // pred_check_branch
      %85 = sbr.rel (0) target = $region45
    $region44: #{tpu_custom_call.1} parent=1 // pred_region
      %87 = dma.done [#allocation7], 128
    $region45: #{tpu_custom_call.1} parent=1 // pred_fallthru
      _
    // Predicated region
    $region46: #{tpu_custom_call.1} parent=1 // pred_check
      _
    $region47: #{tpu_custom_call.1} parent=1 // pred_check_branch
      %89 = sbr.rel (0) target = $region49
    $region48: #{tpu_custom_call.1} parent=1 // pred_region
      %91 = dma.done [#allocation7], 256
    $region49: #{tpu_custom_call.1} parent=1 // pred_fallthru
      _
    // Predicated region
    $region50: #{tpu_custom_call.1} parent=1 // pred_check
      _
    $region51: #{tpu_custom_call.1} parent=1 // pred_check_branch
      %93 = sbr.rel (0) target = $region53
    $region52: #{tpu_custom_call.1} parent=1 // pred_region
      %95 = dma.done [#allocation10], 256
    $region53: #{tpu_custom_call.1} parent=1 // pred_fallthru
      _
    %v97 = vld [vmem:[%s7] sm:$0xf]
    %v98 = vld [vmem:[%s7 + $0x4] sm:$0xf]
    %v99 = vld [vmem:[%s7 + $0x8] sm:$0xf]
    %v100 = vld [vmem:[%s7 + $0xc] sm:$0xf]
    %v101 = vld [vmem:[%s8] sm:$0x1]
    %v102 = vld [vmem:[#allocation6] sm:$0xf]
    %v103 = vld [vmem:[#allocation6 + $0x4] sm:$0xf]
    %v104 = vld [vmem:[%s2] sm:$0xf]
    %v105 = vld [vmem:[%s2 + $0x4] sm:$0xf]
    %v106 = vld [vmem:[%s2 + $0x8] sm:$0xf]
    %v107 = vld [vmem:[%s2 + $0xc] sm:$0xf]
    %v108 = vld [vmem:[%s3] sm:$0x1]
    %v109 = vld [vmem:[#allocation3] sm:$0xf]
    %v110 = vld [vmem:[#allocation3 + $0x4] sm:$0xf]
    %v112 = vperm.slane %v108, 0
    %v116 = vunpack.c.l.b16 %v109
    %v117 = vunpack.c.l.b16 %v110
    %v118 = vpack.c.b16 %v117, %v116
    %v121 = vunpack.c.l.b16 %v102
    %v122 = vunpack.c.l.b16 %v103
    %v123 = vpack.c.b16 %v122, %v121
    %vm125 = vcmask 130048
    %v127 = vsel %vm125, %v118, 0
    %129 = vmatpush.bf16.msra.mxu0 0
    %130 = vmatpush.bf16.msra.mxu0 0
    %131 = vmatpush.bf16.msra.mxu0 0
    %132 = vmatpush.bf16.msra.mxu0 0
    %133 = vmatpush.bf16.msra.mxu0 0
    %134 = vmatpush.bf16.msra.mxu0 0
    %135 = vmatpush.bf16.msra.mxu0 0
    %136 = vmatpush.bf16.msra.mxu0 %v123
    %137 = vmatmul.bf16.gmra.mxu0 %v127
    %v138 = vpop.f32.mrf.mxu0
    %v139 = vadd.f32 %v112, %v138
    %v140 = vpop.f32.mrf.mxu0
    %v141 = vadd.f32 %v112, %v140
    %142 = vdwg.mxu0
    %v147 = vunpack.c.l.b16 %v104
    %v148 = vunpack.c.l.b16 %v105
    %v149 = vunpack.c.l.b16 %v106
    %v150 = vunpack.c.l.b16 %v107
    %v151 = vpack.c.b16 %v148, %v147
    %v152 = vpack.c.b16 %v150, %v149
    %vm155 = vcmask 261120
    %v157 = vsel %vm155, 0, 0
    %159 = vmatpush.bf16.msra.mxu0 0
    %160 = vmatpush.bf16.msra.mxu0 0
    %161 = vmatpush.bf16.msra.mxu0 0
    %162 = vmatpush.bf16.msra.mxu0 0
    %163 = vmatpush.bf16.msra.mxu0 0
    %164 = vmatpush.bf16.msra.mxu0 0
    %165 = vmatpush.bf16.msra.mxu0 %v152
    %166 = vmatpush.bf16.msra.mxu0 %v151
    %167 = vmatmul.bf16.gmra.mxu0 %v157
    %v168 = vpop.f32.mrf.mxu0
    %v169 = vadd.f32 0.0, %v168
    %v170 = vpop.f32.mrf.mxu0
    %171 = vdwg.mxu0
    %v172 = vadd.f32 %v139, %v169
    %v173 = vxor.u32 %v172, 2147483648
    %v174 = vmul.f32 %v173, 1.442695
    %v175 = vpow.pop %v174
    %v176 = vadd.f32 %v175, 1.0
    %v177 = vrcp.pop %v176
    %v178 = vmul.f32 %v176, %v177
    %v179 = vsub.f32 1.0, %v178
    %v180 = vmul.f32 %v177, %v179
    %v181 = vadd.f32 %v177, %v180
    %vm182 = vweird.f32 %v176
    %vm183 = vweird.f32 %v177
    %vm184 = vmor %vm182, %vm183
    %v185 = vsel %vm184, %v177, %v181
    %v186 = vand.u32 2147483647, %v176
    %vm187 = vcmp.eq.f32.partialorder %v186, 8.507059e+37
    %v188 = vand.u32 %v176, 2147483648
    %v189 = vor.u32 1.1754944e-38, %v188
    %v190 = vsel %vm187, %v189, %v185
    %v191 = vmul.f32 1.0, %v190
    %v192 = vtanh.pop %v172
    %v193 = vmul.f32 %v191, 0.0
    %195 = vrot.lane.b32.xlu0 %v192, 64
    %v196 = vpop.permute.xlu0 %195
    %v198 = vmul.f32 %v191, %v196
    %200 = vrot.lane.b32.xlu0 %v198, 32
    %v201 = vpop.permute.xlu0 %200
    %v203 = vadd.f32 %v193, %v201
    %v204 = vtanh.pop %v203
    %206 = vrot.lane.b32.xlu0 %v204, 64
    %v207 = vpop.permute.xlu0 %206
    %v209 = vmul.f32 %v191, %v207
    %211 = vrot.lane.b32.xlu0 %v209, 32
    %v212 = vpop.permute.xlu0 %211
    %vm214 = vcmask 254976
    %215 = vst.msk [vmem:[#allocation2] sm:$0x3] %vm214, %v212
    %v216 = vpack.c.bf16 %v209, %v209
    %218 = vrot.lane.b32.xlu0 %v216, 32
    %v219 = vpop.permute.xlu0 %218
    %v221 = vsel %vm155, %v219, 0
    %223 = vmatpush.bf16.msra.mxu0 0
    %224 = vmatpush.bf16.msra.mxu0 0
    %225 = vmatpush.bf16.msra.mxu0 0
    %226 = vmatpush.bf16.msra.mxu0 0
    %227 = vmatpush.bf16.msra.mxu0 0
    %228 = vmatpush.bf16.msra.mxu0 0
    %229 = vmatpush.bf16.msra.mxu0 %v152
    %230 = vmatpush.bf16.msra.mxu0 %v151
    %231 = vmatmul.bf16.gmra.mxu0 %v221
    %v232 = vpop.f32.mrf.mxu0
    %v233 = vadd.f32 0.0, %v232
    %v234 = vpop.f32.mrf.mxu0
    %235 = vdwg.mxu0
    %v237 = vrot.slane %v233, 6
    %v239 = vadd.f32 %v139, %v237
    %v240 = vxor.u32 %v239, 2147483648
    %v241 = vmul.f32 %v240, 1.442695
    %v242 = vpow.pop %v241
    %v243 = vadd.f32 %v242, 1.0
    %v244 = vrcp.pop %v243
    %v245 = vmul.f32 %v243, %v244
    %v246 = vsub.f32 1.0, %v245
    %v247 = vmul.f32 %v244, %v246
    %v248 = vadd.f32 %v244, %v247
    %vm249 = vweird.f32 %v243
    %vm250 = vweird.f32 %v244
    %vm251 = vmor %vm249, %vm250
    %v252 = vsel %vm251, %v244, %v248
    %v253 = vand.u32 2147483647, %v243
    %vm254 = vcmp.eq.f32.partialorder %v253, 8.507059e+37
    %v255 = vand.u32 %v243, 2147483648
    %v256 = vor.u32 1.1754944e-38, %v255
    %v257 = vsel %vm254, %v256, %v252
    %v258 = vmul.f32 1.0, %v257
    %v259 = vtanh.pop %v239
    %v261 = vrot.slane %v203, 6
    %v263 = vmul.f32 %v258, %v261
    %265 = vrot.lane.b32.xlu0 %v259, 64
    %v266 = vpop.permute.xlu0 %265
    %v268 = vmul.f32 %v258, %v266
    %270 = vrot.lane.b32.xlu0 %v268, 32
    %v271 = vpop.permute.xlu0 %270
    %v273 = vadd.f32 %v263, %v271
    %v274 = vtanh.pop %v273
    %276 = vrot.lane.b32.xlu0 %v274, 64
    %v277 = vpop.permute.xlu0 %276
    %v279 = vmul.f32 %v258, %v277
    %281 = vrot.lane.b32.xlu0 %v279, 32
    %v282 = vpop.permute.xlu0 %281
    %vm284 = vcmask 257026
    %285 = vst.msk [vmem:[#allocation2] sm:$0xc] %vm284, %v282
    %v286 = vpack.c.bf16 %v279, %v279
    %v288 = vrot.slane %v286, 1
    %289 = vrot.lane.b32.xlu0 %v288, 32
    %v290 = vpop.permute.xlu0 %289
    %v292 = vsel %vm155, %v290, 0
    %294 = vmatpush.bf16.msra.mxu0 0
    %295 = vmatpush.bf16.msra.mxu0 0
    %296 = vmatpush.bf16.msra.mxu0 0
    %297 = vmatpush.bf16.msra.mxu0 0
    %298 = vmatpush.bf16.msra.mxu0 0
    %299 = vmatpush.bf16.msra.mxu0 0
    %300 = vmatpush.bf16.msra.mxu0 %v152
    %301 = vmatpush.bf16.msra.mxu0 %v151
    %302 = vmatmul.bf16.gmra.mxu0 %v292
    %v303 = vpop.f32.mrf.mxu0
    %v304 = vadd.f32 0.0, %v303
    %v305 = vpop.f32.mrf.mxu0
    %306 = vdwg.mxu0
    %v308 = vrot.slane %v304, 4
    %v310 = vadd.f32 %v139, %v308
    %v311 = vxor.u32 %v310, 2147483648
    %v312 = vmul.f32 %v311, 1.442695
    %v313 = vpow.pop %v312
    %v314 = vadd.f32 %v313, 1.0
    %v315 = vrcp.pop %v314
    %v316 = vmul.f32 %v314, %v315
    %v317 = vsub.f32 1.0, %v316
    %v318 = vmul.f32 %v315, %v317
    %v319 = vadd.f32 %v315, %v318
    %vm320 = vweird.f32 %v314
    %vm321 = vweird.f32 %v315
    %vm322 = vmor %vm320, %vm321
    %v323 = vsel %vm322, %v315, %v319
    %v324 = vand.u32 2147483647, %v314
    %vm325 = vcmp.eq.f32.partialorder %v324, 8.507059e+37
    %v326 = vand.u32 %v314, 2147483648
    %v327 = vor.u32 1.1754944e-38, %v326
    %v328 = vsel %vm325, %v327, %v323
    %v329 = vmul.f32 1.0, %v328
    %v330 = vtanh.pop %v310
    %v332 = vrot.slane %v273, 6
    %v334 = vmul.f32 %v329, %v332
    %336 = vrot.lane.b32.xlu0 %v330, 64
    %v337 = vpop.permute.xlu0 %336
    %v339 = vmul.f32 %v329, %v337
    %341 = vrot.lane.b32.xlu0 %v339, 32
    %v342 = vpop.permute.xlu0 %341
    %v344 = vadd.f32 %v334, %v342
    %v345 = vtanh.pop %v344
    %347 = vrot.lane.b32.xlu0 %v345, 64
    %v348 = vpop.permute.xlu0 %347
    %v350 = vmul.f32 %v329, %v348
    %352 = vrot.lane.b32.xlu0 %v350, 32
    %v353 = vpop.permute.xlu0 %352
    %vm355 = vcmask 259076
    %356 = vst.msk [vmem:[#allocation2] sm:$0x30] %vm355, %v353
    %v357 = vpack.c.bf16 %v350, %v350
    %v359 = vrot.slane %v357, 2
    %360 = vrot.lane.b32.xlu0 %v359, 32
    %v361 = vpop.permute.xlu0 %360
    %v363 = vsel %vm155, %v361, 0
    %365 = vmatpush.bf16.msra.mxu0 0
    %366 = vmatpush.bf16.msra.mxu0 0
    %367 = vmatpush.bf16.msra.mxu0 0
    %368 = vmatpush.bf16.msra.mxu0 0
    %369 = vmatpush.bf16.msra.mxu0 0
    %370 = vmatpush.bf16.msra.mxu0 0
    %371 = vmatpush.bf16.msra.mxu0 %v152
    %372 = vmatpush.bf16.msra.mxu0 %v151
    %373 = vmatmul.bf16.gmra.mxu0 %v363
    %v374 = vpop.f32.mrf.mxu0
    %v375 = vadd.f32 0.0, %v374
    %v376 = vpop.f32.mrf.mxu0
    %377 = vdwg.mxu0
    %v379 = vrot.slane %v375, 2
    %v381 = vadd.f32 %v139, %v379
    %v382 = vxor.u32 %v381, 2147483648
    %v383 = vmul.f32 %v382, 1.442695
    %v384 = vpow.pop %v383
    %v385 = vadd.f32 %v384, 1.0
    %v386 = vrcp.pop %v385
    %v387 = vmul.f32 %v385, %v386
    %v388 = vsub.f32 1.0, %v387
    %v389 = vmul.f32 %v386, %v388
    %v390 = vadd.f32 %v386, %v389
    %vm391 = vweird.f32 %v385
    %vm392 = vweird.f32 %v386
    %vm393 = vmor %vm391, %vm392
    %v394 = vsel %vm393, %v386, %v390
    %v395 = vand.u32 2147483647, %v385
    %vm396 = vcmp.eq.f32.partialorder %v395, 8.507059e+37
    %v397 = vand.u32 %v385, 2147483648
    %v398 = vor.u32 1.1754944e-38, %v397
    %v399 = vsel %vm396, %v398, %v394
    %v400 = vmul.f32 1.0, %v399
    %v401 = vtanh.pop %v381
    %v403 = vrot.slane %v344, 6
    %v405 = vmul.f32 %v400, %v403
    %407 = vrot.lane.b32.xlu0 %v401, 64
    %v408 = vpop.permute.xlu0 %407
    %v410 = vmul.f32 %v400, %v408
    %412 = vrot.lane.b32.xlu0 %v410, 32
    %v413 = vpop.permute.xlu0 %412
    %v415 = vadd.f32 %v405, %v413
    %v416 = vtanh.pop %v415
    %418 = vrot.lane.b32.xlu0 %v416, 64
    %v419 = vpop.permute.xlu0 %418
    %v421 = vmul.f32 %v400, %v419
    %423 = vrot.lane.b32.xlu0 %v421, 32
    %v424 = vpop.permute.xlu0 %423
    %vm426 = vcmask 261126
    %427 = vst.msk [vmem:[#allocation2] sm:$0xc0] %vm426, %v424
    %v428 = vpack.c.bf16 %v421, %v421
    %v430 = vrot.slane %v428, 3
    %431 = vrot.lane.b32.xlu0 %v430, 32
    %v432 = vpop.permute.xlu0 %431
    %v434 = vsel %vm155, %v432, 0
    %436 = vmatpush.bf16.msra.mxu0 0
    %437 = vmatpush.bf16.msra.mxu0 0
    %438 = vmatpush.bf16.msra.mxu0 0
    %439 = vmatpush.bf16.msra.mxu0 0
    %440 = vmatpush.bf16.msra.mxu0 0
    %441 = vmatpush.bf16.msra.mxu0 0
    %442 = vmatpush.bf16.msra.mxu0 %v152
    %443 = vmatpush.bf16.msra.mxu0 %v151
    %444 = vmatmul.bf16.gmra.mxu0 %v434
    %v445 = vpop.f32.mrf.mxu0
    %v446 = vadd.f32 0.0, %v445
    %v447 = vpop.f32.mrf.mxu0
    %448 = vdwg.mxu0
    %v449 = vadd.f32 %v141, %v446
    %v450 = vxor.u32 %v449, 2147483648
    %v451 = vmul.f32 %v450, 1.442695
    %v452 = vpow.pop %v451
    %v453 = vadd.f32 %v452, 1.0
    %v454 = vrcp.pop %v453
    %v455 = vmul.f32 %v453, %v454
    %v456 = vsub.f32 1.0, %v455
    %v457 = vmul.f32 %v454, %v456
    %v458 = vadd.f32 %v454, %v457
    %vm459 = vweird.f32 %v453
    %vm460 = vweird.f32 %v454
    %vm461 = vmor %vm459, %vm460
    %v462 = vsel %vm461, %v454, %v458
    %v463 = vand.u32 2147483647, %v453
    %vm464 = vcmp.eq.f32.partialorder %v463, 8.507059e+37
    %v465 = vand.u32 %v453, 2147483648
    %v466 = vor.u32 1.1754944e-38, %v465
    %v467 = vsel %vm464, %v466, %v462
    %v468 = vmul.f32 1.0, %v467
    %v469 = vtanh.pop %v449
    %v471 = vrot.slane %v415, 6
    %v473 = vmul.f32 %v468, %v471
    %475 = vrot.lane.b32.xlu0 %v469, 64
    %v476 = vpop.permute.xlu0 %475
    %v478 = vmul.f32 %v468, %v476
    %480 = vrot.lane.b32.xlu0 %v478, 32
    %v481 = vpop.permute.xlu0 %480
    %v483 = vadd.f32 %v473, %v481
    %v484 = vtanh.pop %v483
    %486 = vrot.lane.b32.xlu0 %v484, 64
    %v487 = vpop.permute.xlu0 %486
    %v489 = vmul.f32 %v468, %v487
    %491 = vrot.lane.b32.xlu0 %v489, 32
    %v492 = vpop.permute.xlu0 %491
    %494 = vst.msk [vmem:[#allocation2 + $0x8] sm:$0x3] %vm214, %v492
    %v495 = vpack.c.bf16 %v489, %v489
    %497 = vrot.lane.b32.xlu0 %v495, 32
    %v498 = vpop.permute.xlu0 %497
    %v500 = vsel %vm155, %v498, 0
    %502 = vmatpush.bf16.msra.mxu0 0
    %503 = vmatpush.bf16.msra.mxu0 0
    %504 = vmatpush.bf16.msra.mxu0 0
    %505 = vmatpush.bf16.msra.mxu0 0
    %506 = vmatpush.bf16.msra.mxu0 0
    %507 = vmatpush.bf16.msra.mxu0 0
    %508 = vmatpush.bf16.msra.mxu0 %v152
    %509 = vmatpush.bf16.msra.mxu0 %v151
    %510 = vmatmul.bf16.gmra.mxu0 %v500
    %v511 = vpop.f32.mrf.mxu0
    %v512 = vadd.f32 0.0, %v511
    %v513 = vpop.f32.mrf.mxu0
    %514 = vdwg.mxu0
    %v516 = vrot.slane %v512, 6
    %v518 = vadd.f32 %v141, %v516
    %v519 = vxor.u32 %v518, 2147483648
    %v520 = vmul.f32 %v519, 1.442695
    %v521 = vpow.pop %v520
    %v522 = vadd.f32 %v521, 1.0
    %v523 = vrcp.pop %v522
    %v524 = vmul.f32 %v522, %v523
    %v525 = vsub.f32 1.0, %v524
    %v526 = vmul.f32 %v523, %v525
    %v527 = vadd.f32 %v523, %v526
    %vm528 = vweird.f32 %v522
    %vm529 = vweird.f32 %v523
    %vm530 = vmor %vm528, %vm529
    %v531 = vsel %vm530, %v523, %v527
    %v532 = vand.u32 2147483647, %v522
    %vm533 = vcmp.eq.f32.partialorder %v532, 8.507059e+37
    %v534 = vand.u32 %v522, 2147483648
    %v535 = vor.u32 1.1754944e-38, %v534
    %v536 = vsel %vm533, %v535, %v531
    %v537 = vmul.f32 1.0, %v536
    %v538 = vtanh.pop %v518
    %v540 = vrot.slane %v483, 6
    %v542 = vmul.f32 %v537, %v540
    %544 = vrot.lane.b32.xlu0 %v538, 64
    %v545 = vpop.permute.xlu0 %544
    %v547 = vmul.f32 %v537, %v545
    %549 = vrot.lane.b32.xlu0 %v547, 32
    %v550 = vpop.permute.xlu0 %549
    %v552 = vadd.f32 %v542, %v550
    %v553 = vtanh.pop %v552
    %555 = vrot.lane.b32.xlu0 %v553, 64
    %v556 = vpop.permute.xlu0 %555
    %v558 = vmul.f32 %v537, %v556
    %560 = vrot.lane.b32.xlu0 %v558, 32
    %v561 = vpop.permute.xlu0 %560
    %563 = vst.msk [vmem:[#allocation2 + $0x8] sm:$0xc] %vm284, %v561
    %v564 = vpack.c.bf16 %v558, %v558
    %v566 = vrot.slane %v564, 1
    %567 = vrot.lane.b32.xlu0 %v566, 32
    %v568 = vpop.permute.xlu0 %567
    %v570 = vsel %vm155, %v568, 0
    %572 = vmatpush.bf16.msra.mxu0 0
    %573 = vmatpush.bf16.msra.mxu0 0
    %574 = vmatpush.bf16.msra.mxu0 0
    %575 = vmatpush.bf16.msra.mxu0 0
    %576 = vmatpush.bf16.msra.mxu0 0
    %577 = vmatpush.bf16.msra.mxu0 0
    %578 = vmatpush.bf16.msra.mxu0 %v152
    %579 = vmatpush.bf16.msra.mxu0 %v151
    %580 = vmatmul.bf16.gmra.mxu0 %v570
    %v581 = vpop.f32.mrf.mxu0
    %v582 = vadd.f32 0.0, %v581
    %v583 = vpop.f32.mrf.mxu0
    %584 = vdwg.mxu0
    %v586 = vrot.slane %v582, 4
    %v588 = vadd.f32 %v141, %v586
    %v589 = vxor.u32 %v588, 2147483648
    %v590 = vmul.f32 %v589, 1.442695
    %v591 = vpow.pop %v590
    %v592 = vadd.f32 %v591, 1.0
    %v593 = vrcp.pop %v592
    %v594 = vmul.f32 %v592, %v593
    %v595 = vsub.f32 1.0, %v594
    %v596 = vmul.f32 %v593, %v595
    %v597 = vadd.f32 %v593, %v596
    %vm598 = vweird.f32 %v592
    %vm599 = vweird.f32 %v593
    %vm600 = vmor %vm598, %vm599
    %v601 = vsel %vm600, %v593, %v597
    %v602 = vand.u32 2147483647, %v592
    %vm603 = vcmp.eq.f32.partialorder %v602, 8.507059e+37
    %v604 = vand.u32 %v592, 2147483648
    %v605 = vor.u32 1.1754944e-38, %v604
    %v606 = vsel %vm603, %v605, %v601
    %v607 = vmul.f32 1.0, %v606
    %v608 = vtanh.pop %v588
    %v610 = vrot.slane %v552, 6
    %v612 = vmul.f32 %v607, %v610
    %614 = vrot.lane.b32.xlu0 %v608, 64
    %v615 = vpop.permute.xlu0 %614
    %v617 = vmul.f32 %v607, %v615
    %619 = vrot.lane.b32.xlu0 %v617, 32
    %v620 = vpop.permute.xlu0 %619
    %v622 = vadd.f32 %v612, %v620
    %v623 = vtanh.pop %v622
    %625 = vrot.lane.b32.xlu0 %v623, 64
    %v626 = vpop.permute.xlu0 %625
    %v628 = vmul.f32 %v607, %v626
    %630 = vrot.lane.b32.xlu0 %v628, 32
    %v631 = vpop.permute.xlu0 %630
    %633 = vst.msk [vmem:[#allocation2 + $0x8] sm:$0x30] %vm355, %v631
    %v634 = vpack.c.bf16 %v628, %v628
    %v636 = vrot.slane %v634, 2
    %637 = vrot.lane.b32.xlu0 %v636, 32
    %v638 = vpop.permute.xlu0 %637
    %v640 = vsel %vm155, %v638, 0
    %642 = vmatpush.bf16.msra.mxu0 0
    %643 = vmatpush.bf16.msra.mxu0 0
    %644 = vmatpush.bf16.msra.mxu0 0
    %645 = vmatpush.bf16.msra.mxu0 0
    %646 = vmatpush.bf16.msra.mxu0 0
    %647 = vmatpush.bf16.msra.mxu0 0
    %648 = vmatpush.bf16.msra.mxu0 %v152
    %649 = vmatpush.bf16.msra.mxu0 %v151
    %650 = vmatmul.bf16.gmra.mxu0 %v640
    %v651 = vpop.f32.mrf.mxu0
    %v652 = vadd.f32 0.0, %v651
    %v653 = vpop.f32.mrf.mxu0
    %654 = vdwg.mxu0
    %v656 = vrot.slane %v652, 2
    %v658 = vadd.f32 %v141, %v656
    %v659 = vxor.u32 %v658, 2147483648
    %v660 = vmul.f32 %v659, 1.442695
    %v661 = vpow.pop %v660
    %v662 = vadd.f32 %v661, 1.0
    %v663 = vrcp.pop %v662
    %v664 = vmul.f32 %v662, %v663
    %v665 = vsub.f32 1.0, %v664
    %v666 = vmul.f32 %v663, %v665
    %v667 = vadd.f32 %v663, %v666
    %vm668 = vweird.f32 %v662
    %vm669 = vweird.f32 %v663
    %vm670 = vmor %vm668, %vm669
    %v671 = vsel %vm670, %v663, %v667
    %v672 = vand.u32 2147483647, %v662
    %vm673 = vcmp.eq.f32.partialorder %v672, 8.507059e+37
    %v674 = vand.u32 %v662, 2147483648
    %v675 = vor.u32 1.1754944e-38, %v674
    %v676 = vsel %vm673, %v675, %v671
    %v677 = vmul.f32 1.0, %v676
    %v678 = vtanh.pop %v658
    %v680 = vrot.slane %v622, 6
    %v682 = vmul.f32 %v677, %v680
    %684 = vrot.lane.b32.xlu0 %v678, 64
    %v685 = vpop.permute.xlu0 %684
    %v687 = vmul.f32 %v677, %v685
    %689 = vrot.lane.b32.xlu0 %v687, 32
    %v690 = vpop.permute.xlu0 %689
    %v692 = vadd.f32 %v682, %v690
    %v693 = vtanh.pop %v692
    %695 = vrot.lane.b32.xlu0 %v693, 64
    %v696 = vpop.permute.xlu0 %695
    %v698 = vmul.f32 %v677, %v696
    %700 = vrot.lane.b32.xlu0 %v698, 32
    %v701 = vpop.permute.xlu0 %700
    %703 = vst.msk [vmem:[#allocation2 + $0x8] sm:$0xc0] %vm426, %v701
    %v704 = vld [vmem:[#allocation8] sm:$0xf]
    %v705 = vld [vmem:[#allocation8 + $0x4] sm:$0xf]
    %v706 = vld [vmem:[#allocation8 + $0x8] sm:$0xf]
    %v707 = vld [vmem:[#allocation8 + $0xc] sm:$0xf]
    %v708 = vld [vmem:[#allocation9] sm:$0xf]
    %v709 = vld [vmem:[#allocation9 + $0x4] sm:$0xf]
    %v710 = vld [vmem:[#allocation9 + $0x8] sm:$0xf]
    %v711 = vld [vmem:[#allocation9 + $0xc] sm:$0xf]
    %v712 = vld [vmem:[%s6] sm:$0x1]
    %v713 = vld [vmem:[#allocation2] sm:$0xff]
    %v714 = vld [vmem:[#allocation2 + $0x8] sm:$0xff]
    %v715 = vpack.c.bf16 %v714, %v713
    %v717 = vperm.slane %v712, 0
    %v723 = vunpack.c.l.b16 %v704
    %v724 = vunpack.c.l.b16 %v705
    %v725 = vunpack.c.l.b16 %v706
    %v726 = vunpack.c.l.b16 %v707
    %v727 = vpack.c.b16 %v724, %v723
    %v728 = vpack.c.b16 %v726, %v725
    %v732 = vsel %vm155, %v715, 0
    %734 = vmatpush.bf16.msra.mxu0 0
    %735 = vmatpush.bf16.msra.mxu0 0
    %736 = vmatpush.bf16.msra.mxu0 0
    %737 = vmatpush.bf16.msra.mxu0 0
    %738 = vmatpush.bf16.msra.mxu0 0
    %739 = vmatpush.bf16.msra.mxu0 0
    %740 = vmatpush.bf16.msra.mxu0 %v728
    %741 = vmatpush.bf16.msra.mxu0 %v727
    %742 = vmatmul.bf16.gmra.mxu0 %v732
    %v743 = vpop.f32.mrf.mxu0
    %v744 = vadd.f32 %v717, %v743
    %v745 = vpop.f32.mrf.mxu0
    %v746 = vadd.f32 %v717, %v745
    %747 = vdwg.mxu0
    %v752 = vunpack.c.l.b16 %v708
    %v753 = vunpack.c.l.b16 %v709
    %v754 = vunpack.c.l.b16 %v710
    %v755 = vunpack.c.l.b16 %v711
    %v756 = vpack.c.b16 %v753, %v752
    %v757 = vpack.c.b16 %v755, %v754
    %760 = vmatpush.bf16.msra.mxu0 0
    %761 = vmatpush.bf16.msra.mxu0 0
    %762 = vmatpush.bf16.msra.mxu0 0
    %763 = vmatpush.bf16.msra.mxu0 0
    %764 = vmatpush.bf16.msra.mxu0 0
    %765 = vmatpush.bf16.msra.mxu0 0
    %766 = vmatpush.bf16.msra.mxu0 %v757
    %767 = vmatpush.bf16.msra.mxu0 %v756
    %768 = vmatmul.bf16.gmra.mxu0 %v157
    %v769 = vpop.f32.mrf.mxu0
    %v770 = vadd.f32 0.0, %v769
    %v771 = vpop.f32.mrf.mxu0
    %772 = vdwg.mxu0
    %v773 = vadd.f32 %v744, %v770
    %v774 = vxor.u32 %v773, 2147483648
    %v775 = vmul.f32 %v774, 1.442695
    %v776 = vpow.pop %v775
    %v777 = vadd.f32 %v776, 1.0
    %v778 = vrcp.pop %v777
    %v779 = vmul.f32 %v777, %v778
    %v780 = vsub.f32 1.0, %v779
    %v781 = vmul.f32 %v778, %v780
    %v782 = vadd.f32 %v778, %v781
    %vm783 = vweird.f32 %v777
    %vm784 = vweird.f32 %v778
    %vm785 = vmor %vm783, %vm784
    %v786 = vsel %vm785, %v778, %v782
    %v787 = vand.u32 2147483647, %v777
    %vm788 = vcmp.eq.f32.partialorder %v787, 8.507059e+37
    %v789 = vand.u32 %v777, 2147483648
    %v790 = vor.u32 1.1754944e-38, %v789
    %v791 = vsel %vm788, %v790, %v786
    %v792 = vmul.f32 1.0, %v791
    %v793 = vtanh.pop %v773
    %v794 = vmul.f32 %v792, 0.0
    %796 = vrot.lane.b32.xlu0 %v793, 64
    %v797 = vpop.permute.xlu0 %796
    %v799 = vmul.f32 %v792, %v797
    %801 = vrot.lane.b32.xlu0 %v799, 32
    %v802 = vpop.permute.xlu0 %801
    %v804 = vadd.f32 %v794, %v802
    %v805 = vtanh.pop %v804
    %807 = vrot.lane.b32.xlu0 %v805, 64
    %v808 = vpop.permute.xlu0 %807
    %v810 = vmul.f32 %v792, %v808
    %v811 = vpack.c.bf16 %v810, %v810
    %813 = vrot.lane.b32.xlu0 %v811, 32
    %v814 = vpop.permute.xlu0 %813
    %v816 = vsel %vm155, %v814, 0
    %818 = vmatpush.bf16.msra.mxu0 0
    %819 = vmatpush.bf16.msra.mxu0 0
    %820 = vmatpush.bf16.msra.mxu0 0
    %821 = vmatpush.bf16.msra.mxu0 0
    %822 = vmatpush.bf16.msra.mxu0 0
    %823 = vmatpush.bf16.msra.mxu0 0
    %824 = vmatpush.bf16.msra.mxu0 %v757
    %825 = vmatpush.bf16.msra.mxu0 %v756
    %826 = vmatmul.bf16.gmra.mxu0 %v816
    %v827 = vpop.f32.mrf.mxu0
    %v828 = vadd.f32 0.0, %v827
    %v829 = vpop.f32.mrf.mxu0
    %830 = vdwg.mxu0
    %v832 = vrot.slane %v828, 6
    %v834 = vadd.f32 %v744, %v832
    %v835 = vxor.u32 %v834, 2147483648
    %v836 = vmul.f32 %v835, 1.442695
    %v837 = vpow.pop %v836
    %v838 = vadd.f32 %v837, 1.0
    %v839 = vrcp.pop %v838
    %v840 = vmul.f32 %v838, %v839
    %v841 = vsub.f32 1.0, %v840
    %v842 = vmul.f32 %v839, %v841
    %v843 = vadd.f32 %v839, %v842
    %vm844 = vweird.f32 %v838
    %vm845 = vweird.f32 %v839
    %vm846 = vmor %vm844, %vm845
    %v847 = vsel %vm846, %v839, %v843
    %v848 = vand.u32 2147483647, %v838
    %vm849 = vcmp.eq.f32.partialorder %v848, 8.507059e+37
    %v850 = vand.u32 %v838, 2147483648
    %v851 = vor.u32 1.1754944e-38, %v850
    %v852 = vsel %vm849, %v851, %v847
    %v853 = vmul.f32 1.0, %v852
    %v854 = vtanh.pop %v834
    %v856 = vrot.slane %v804, 6
    %v858 = vmul.f32 %v853, %v856
    %860 = vrot.lane.b32.xlu0 %v854, 64
    %v861 = vpop.permute.xlu0 %860
    %v863 = vmul.f32 %v853, %v861
    %865 = vrot.lane.b32.xlu0 %v863, 32
    %v866 = vpop.permute.xlu0 %865
    %v868 = vadd.f32 %v858, %v866
    %v869 = vtanh.pop %v868
    %871 = vrot.lane.b32.xlu0 %v869, 64
    %v872 = vpop.permute.xlu0 %871
    %v874 = vmul.f32 %v853, %v872
    %v875 = vpack.c.bf16 %v874, %v874
    %v877 = vrot.slane %v875, 1
    %878 = vrot.lane.b32.xlu0 %v877, 32
    %v879 = vpop.permute.xlu0 %878
    %v881 = vsel %vm155, %v879, 0
    %883 = vmatpush.bf16.msra.mxu0 0
    %884 = vmatpush.bf16.msra.mxu0 0
    %885 = vmatpush.bf16.msra.mxu0 0
    %886 = vmatpush.bf16.msra.mxu0 0
    %887 = vmatpush.bf16.msra.mxu0 0
    %888 = vmatpush.bf16.msra.mxu0 0
    %889 = vmatpush.bf16.msra.mxu0 %v757
    %890 = vmatpush.bf16.msra.mxu0 %v756
    %891 = vmatmul.bf16.gmra.mxu0 %v881
    %v892 = vpop.f32.mrf.mxu0
    %v893 = vadd.f32 0.0, %v892
    %v894 = vpop.f32.mrf.mxu0
    %895 = vdwg.mxu0
    %v897 = vrot.slane %v893, 4
    %v899 = vadd.f32 %v744, %v897
    %v900 = vxor.u32 %v899, 2147483648
    %v901 = vmul.f32 %v900, 1.442695
    %v902 = vpow.pop %v901
    %v903 = vadd.f32 %v902, 1.0
    %v904 = vrcp.pop %v903
    %v905 = vmul.f32 %v903, %v904
    %v906 = vsub.f32 1.0, %v905
    %v907 = vmul.f32 %v904, %v906
    %v908 = vadd.f32 %v904, %v907
    %vm909 = vweird.f32 %v903
    %vm910 = vweird.f32 %v904
    %vm911 = vmor %vm909, %vm910
    %v912 = vsel %vm911, %v904, %v908
    %v913 = vand.u32 2147483647, %v903
    %vm914 = vcmp.eq.f32.partialorder %v913, 8.507059e+37
    %v915 = vand.u32 %v903, 2147483648
    %v916 = vor.u32 1.1754944e-38, %v915
    %v917 = vsel %vm914, %v916, %v912
    %v918 = vmul.f32 1.0, %v917
    %v919 = vtanh.pop %v899
    %v921 = vrot.slane %v868, 6
    %v923 = vmul.f32 %v918, %v921
    %925 = vrot.lane.b32.xlu0 %v919, 64
    %v926 = vpop.permute.xlu0 %925
    %v928 = vmul.f32 %v918, %v926
    %930 = vrot.lane.b32.xlu0 %v928, 32
    %v931 = vpop.permute.xlu0 %930
    %v933 = vadd.f32 %v923, %v931
    %v934 = vtanh.pop %v933
    %936 = vrot.lane.b32.xlu0 %v934, 64
    %v937 = vpop.permute.xlu0 %936
    %v939 = vmul.f32 %v918, %v937
    %v940 = vpack.c.bf16 %v939, %v939
    %v942 = vrot.slane %v940, 2
    %943 = vrot.lane.b32.xlu0 %v942, 32
    %v944 = vpop.permute.xlu0 %943
    %v946 = vsel %vm155, %v944, 0
    %948 = vmatpush.bf16.msra.mxu0 0
    %949 = vmatpush.bf16.msra.mxu0 0
    %950 = vmatpush.bf16.msra.mxu0 0
    %951 = vmatpush.bf16.msra.mxu0 0
    %952 = vmatpush.bf16.msra.mxu0 0
    %953 = vmatpush.bf16.msra.mxu0 0
    %954 = vmatpush.bf16.msra.mxu0 %v757
    %955 = vmatpush.bf16.msra.mxu0 %v756
    %956 = vmatmul.bf16.gmra.mxu0 %v946
    %v957 = vpop.f32.mrf.mxu0
    %v958 = vadd.f32 0.0, %v957
    %v959 = vpop.f32.mrf.mxu0
    %960 = vdwg.mxu0
    %v962 = vrot.slane %v958, 2
    %v964 = vadd.f32 %v744, %v962
    %v965 = vxor.u32 %v964, 2147483648
    %v966 = vmul.f32 %v965, 1.442695
    %v967 = vpow.pop %v966
    %v968 = vadd.f32 %v967, 1.0
    %v969 = vrcp.pop %v968
    %v970 = vmul.f32 %v968, %v969
    %v971 = vsub.f32 1.0, %v970
    %v972 = vmul.f32 %v969, %v971
    %v973 = vadd.f32 %v969, %v972
    %vm974 = vweird.f32 %v968
    %vm975 = vweird.f32 %v969
    %vm976 = vmor %vm974, %vm975
    %v977 = vsel %vm976, %v969, %v973
    %v978 = vand.u32 2147483647, %v968
    %vm979 = vcmp.eq.f32.partialorder %v978, 8.507059e+37
    %v980 = vand.u32 %v968, 2147483648
    %v981 = vor.u32 1.1754944e-38, %v980
    %v982 = vsel %vm979, %v981, %v977
    %v983 = vmul.f32 1.0, %v982
    %v984 = vtanh.pop %v964
    %v986 = vrot.slane %v933, 6
    %v988 = vmul.f32 %v983, %v986
    %990 = vrot.lane.b32.xlu0 %v984, 64
    %v991 = vpop.permute.xlu0 %990
    %v993 = vmul.f32 %v983, %v991
    %995 = vrot.lane.b32.xlu0 %v993, 32
    %v996 = vpop.permute.xlu0 %995
    %v998 = vadd.f32 %v988, %v996
    %v999 = vtanh.pop %v998
    %1001 = vrot.lane.b32.xlu0 %v999, 64
    %v1002 = vpop.permute.xlu0 %1001
    %v1004 = vmul.f32 %v983, %v1002
    %v1005 = vpack.c.bf16 %v1004, %v1004
    %v1007 = vrot.slane %v1005, 3
    %1008 = vrot.lane.b32.xlu0 %v1007, 32
    %v1009 = vpop.permute.xlu0 %1008
    %v1011 = vsel %vm155, %v1009, 0
    %1013 = vmatpush.bf16.msra.mxu0 0
    %1014 = vmatpush.bf16.msra.mxu0 0
    %1015 = vmatpush.bf16.msra.mxu0 0
    %1016 = vmatpush.bf16.msra.mxu0 0
    %1017 = vmatpush.bf16.msra.mxu0 0
    %1018 = vmatpush.bf16.msra.mxu0 0
    %1019 = vmatpush.bf16.msra.mxu0 %v757
    %1020 = vmatpush.bf16.msra.mxu0 %v756
    %1021 = vmatmul.bf16.gmra.mxu0 %v1011
    %v1022 = vpop.f32.mrf.mxu0
    %v1023 = vadd.f32 0.0, %v1022
    %v1024 = vpop.f32.mrf.mxu0
    %1025 = vdwg.mxu0
    %v1026 = vadd.f32 %v746, %v1023
    %v1027 = vxor.u32 %v1026, 2147483648
    %v1028 = vmul.f32 %v1027, 1.442695
    %v1029 = vpow.pop %v1028
    %v1030 = vadd.f32 %v1029, 1.0
    %v1031 = vrcp.pop %v1030
    %v1032 = vmul.f32 %v1030, %v1031
    %v1033 = vsub.f32 1.0, %v1032
    %v1034 = vmul.f32 %v1031, %v1033
    %v1035 = vadd.f32 %v1031, %v1034
    %vm1036 = vweird.f32 %v1030
    %vm1037 = vweird.f32 %v1031
    %vm1038 = vmor %vm1036, %vm1037
    %v1039 = vsel %vm1038, %v1031, %v1035
    %v1040 = vand.u32 2147483647, %v1030
    %vm1041 = vcmp.eq.f32.partialorder %v1040, 8.507059e+37
    %v1042 = vand.u32 %v1030, 2147483648
    %v1043 = vor.u32 1.1754944e-38, %v1042
    %v1044 = vsel %vm1041, %v1043, %v1039
    %v1045 = vmul.f32 1.0, %v1044
    %v1046 = vtanh.pop %v1026
    %v1048 = vrot.slane %v998, 6
    %v1050 = vmul.f32 %v1045, %v1048
    %1052 = vrot.lane.b32.xlu0 %v1046, 64
    %v1053 = vpop.permute.xlu0 %1052
    %v1055 = vmul.f32 %v1045, %v1053
    %1057 = vrot.lane.b32.xlu0 %v1055, 32
    %v1058 = vpop.permute.xlu0 %1057
    %v1060 = vadd.f32 %v1050, %v1058
    %v1061 = vtanh.pop %v1060
    %1063 = vrot.lane.b32.xlu0 %v1061, 64
    %v1064 = vpop.permute.xlu0 %1063
    %v1066 = vmul.f32 %v1045, %v1064
    %v1067 = vpack.c.bf16 %v1066, %v1066
    %1069 = vrot.lane.b32.xlu0 %v1067, 32
    %v1070 = vpop.permute.xlu0 %1069
    %v1072 = vsel %vm155, %v1070, 0
    %1074 = vmatpush.bf16.msra.mxu0 0
    %1075 = vmatpush.bf16.msra.mxu0 0
    %1076 = vmatpush.bf16.msra.mxu0 0
    %1077 = vmatpush.bf16.msra.mxu0 0
    %1078 = vmatpush.bf16.msra.mxu0 0
    %1079 = vmatpush.bf16.msra.mxu0 0
    %1080 = vmatpush.bf16.msra.mxu0 %v757
    %1081 = vmatpush.bf16.msra.mxu0 %v756
    %1082 = vmatmul.bf16.gmra.mxu0 %v1072
    %v1083 = vpop.f32.mrf.mxu0
    %v1084 = vadd.f32 0.0, %v1083
    %v1085 = vpop.f32.mrf.mxu0
    %1086 = vdwg.mxu0
    %v1088 = vrot.slane %v1084, 6
    %v1090 = vadd.f32 %v746, %v1088
    %v1091 = vxor.u32 %v1090, 2147483648
    %v1092 = vmul.f32 %v1091, 1.442695
    %v1093 = vpow.pop %v1092
    %v1094 = vadd.f32 %v1093, 1.0
    %v1095 = vrcp.pop %v1094
    %v1096 = vmul.f32 %v1094, %v1095
    %v1097 = vsub.f32 1.0, %v1096
    %v1098 = vmul.f32 %v1095, %v1097
    %v1099 = vadd.f32 %v1095, %v1098
    %vm1100 = vweird.f32 %v1094
    %vm1101 = vweird.f32 %v1095
    %vm1102 = vmor %vm1100, %vm1101
    %v1103 = vsel %vm1102, %v1095, %v1099
    %v1104 = vand.u32 2147483647, %v1094
    %vm1105 = vcmp.eq.f32.partialorder %v1104, 8.507059e+37
    %v1106 = vand.u32 %v1094, 2147483648
    %v1107 = vor.u32 1.1754944e-38, %v1106
    %v1108 = vsel %vm1105, %v1107, %v1103
    %v1109 = vmul.f32 1.0, %v1108
    %v1110 = vtanh.pop %v1090
    %v1112 = vrot.slane %v1060, 6
    %v1114 = vmul.f32 %v1109, %v1112
    %1116 = vrot.lane.b32.xlu0 %v1110, 64
    %v1117 = vpop.permute.xlu0 %1116
    %v1119 = vmul.f32 %v1109, %v1117
    %1121 = vrot.lane.b32.xlu0 %v1119, 32
    %v1122 = vpop.permute.xlu0 %1121
    %v1124 = vadd.f32 %v1114, %v1122
    %v1125 = vtanh.pop %v1124
    %1127 = vrot.lane.b32.xlu0 %v1125, 64
    %v1128 = vpop.permute.xlu0 %1127
    %v1130 = vmul.f32 %v1109, %v1128
    %v1131 = vpack.c.bf16 %v1130, %v1130
    %v1133 = vrot.slane %v1131, 1
    %1134 = vrot.lane.b32.xlu0 %v1133, 32
    %v1135 = vpop.permute.xlu0 %1134
    %v1137 = vsel %vm155, %v1135, 0
    %1139 = vmatpush.bf16.msra.mxu0 0
    %1140 = vmatpush.bf16.msra.mxu0 0
    %1141 = vmatpush.bf16.msra.mxu0 0
    %1142 = vmatpush.bf16.msra.mxu0 0
    %1143 = vmatpush.bf16.msra.mxu0 0
    %1144 = vmatpush.bf16.msra.mxu0 0
    %1145 = vmatpush.bf16.msra.mxu0 %v757
    %1146 = vmatpush.bf16.msra.mxu0 %v756
    %1147 = vmatmul.bf16.gmra.mxu0 %v1137
    %v1148 = vpop.f32.mrf.mxu0
    %v1149 = vadd.f32 0.0, %v1148
    %v1150 = vpop.f32.mrf.mxu0
    %1151 = vdwg.mxu0
    %v1153 = vrot.slane %v1149, 4
    %v1155 = vadd.f32 %v746, %v1153
    %v1156 = vxor.u32 %v1155, 2147483648
    %v1157 = vmul.f32 %v1156, 1.442695
    %v1158 = vpow.pop %v1157
    %v1159 = vadd.f32 %v1158, 1.0
    %v1160 = vrcp.pop %v1159
    %v1161 = vmul.f32 %v1159, %v1160
    %v1162 = vsub.f32 1.0, %v1161
    %v1163 = vmul.f32 %v1160, %v1162
    %v1164 = vadd.f32 %v1160, %v1163
    %vm1165 = vweird.f32 %v1159
    %vm1166 = vweird.f32 %v1160
    %vm1167 = vmor %vm1165, %vm1166
    %v1168 = vsel %vm1167, %v1160, %v1164
    %v1169 = vand.u32 2147483647, %v1159
    %vm1170 = vcmp.eq.f32.partialorder %v1169, 8.507059e+37
    %v1171 = vand.u32 %v1159, 2147483648
    %v1172 = vor.u32 1.1754944e-38, %v1171
    %v1173 = vsel %vm1170, %v1172, %v1168
    %v1174 = vmul.f32 1.0, %v1173
    %v1175 = vtanh.pop %v1155
    %v1177 = vrot.slane %v1124, 6
    %v1179 = vmul.f32 %v1174, %v1177
    %1181 = vrot.lane.b32.xlu0 %v1175, 64
    %v1182 = vpop.permute.xlu0 %1181
    %v1184 = vmul.f32 %v1174, %v1182
    %1186 = vrot.lane.b32.xlu0 %v1184, 32
    %v1187 = vpop.permute.xlu0 %1186
    %v1189 = vadd.f32 %v1179, %v1187
    %v1190 = vtanh.pop %v1189
    %1192 = vrot.lane.b32.xlu0 %v1190, 64
    %v1193 = vpop.permute.xlu0 %1192
    %v1195 = vmul.f32 %v1174, %v1193
    %v1196 = vpack.c.bf16 %v1195, %v1195
    %v1198 = vrot.slane %v1196, 2
    %1199 = vrot.lane.b32.xlu0 %v1198, 32
    %v1200 = vpop.permute.xlu0 %1199
    %v1202 = vsel %vm155, %v1200, 0
    %1204 = vmatpush.bf16.msra.mxu0 0
    %1205 = vmatpush.bf16.msra.mxu0 0
    %1206 = vmatpush.bf16.msra.mxu0 0
    %1207 = vmatpush.bf16.msra.mxu0 0
    %1208 = vmatpush.bf16.msra.mxu0 0
    %1209 = vmatpush.bf16.msra.mxu0 0
    %1210 = vmatpush.bf16.msra.mxu0 %v757
    %1211 = vmatpush.bf16.msra.mxu0 %v756
    %1212 = vmatmul.bf16.gmra.mxu0 %v1202
    %v1213 = vpop.f32.mrf.mxu0
    %v1214 = vadd.f32 0.0, %v1213
    %v1215 = vpop.f32.mrf.mxu0
    %1216 = vdwg.mxu0
    %v1218 = vrot.slane %v1214, 2
    %v1220 = vadd.f32 %v746, %v1218
    %v1221 = vxor.u32 %v1220, 2147483648
    %v1222 = vmul.f32 %v1221, 1.442695
    %v1223 = vpow.pop %v1222
    %v1224 = vadd.f32 %v1223, 1.0
    %v1225 = vrcp.pop %v1224
    %v1226 = vmul.f32 %v1224, %v1225
    %v1227 = vsub.f32 1.0, %v1226
    %v1228 = vmul.f32 %v1225, %v1227
    %v1229 = vadd.f32 %v1225, %v1228
    %vm1230 = vweird.f32 %v1224
    %vm1231 = vweird.f32 %v1225
    %vm1232 = vmor %vm1230, %vm1231
    %v1233 = vsel %vm1232, %v1225, %v1229
    %v1234 = vand.u32 2147483647, %v1224
    %vm1235 = vcmp.eq.f32.partialorder %v1234, 8.507059e+37
    %v1236 = vand.u32 %v1224, 2147483648
    %v1237 = vor.u32 1.1754944e-38, %v1236
    %v1238 = vsel %vm1235, %v1237, %v1233
    %v1239 = vmul.f32 1.0, %v1238
    %v1240 = vtanh.pop %v1220
    %v1242 = vrot.slane %v1189, 6
    %v1244 = vmul.f32 %v1239, %v1242
    %1246 = vrot.lane.b32.xlu0 %v1240, 64
    %v1247 = vpop.permute.xlu0 %1246
    %v1249 = vmul.f32 %v1239, %v1247
    %1251 = vrot.lane.b32.xlu0 %v1249, 32
    %v1252 = vpop.permute.xlu0 %1251
    %v1254 = vadd.f32 %v1244, %v1252
    %v1255 = vtanh.pop %v1254
    %1257 = vrot.lane.b32.xlu0 %v1255, 64
    %v1258 = vpop.permute.xlu0 %1257
    %v1260 = vmul.f32 %v1239, %v1258
    %v1261 = vpack.c.bf16 %v1260, %v1260
    %v1263 = vperm.slane %v101, 0
    %v1266 = vrot.slane %v1261, 3
    %1267 = vrot.lane.b32.xlu0 %v1266, 32
    %v1268 = vpop.permute.xlu0 %1267
    %v1273 = vunpack.c.l.b16 %v97
    %v1274 = vunpack.c.l.b16 %v98
    %v1275 = vunpack.c.l.b16 %v99
    %v1276 = vunpack.c.l.b16 %v100
    %v1277 = vpack.c.b16 %v1274, %v1273
    %v1278 = vpack.c.b16 %v1276, %v1275
    %v1282 = vsel %vm155, %v1268, 0
    %1284 = vmatpush.bf16.msra.mxu0 0
    %1285 = vmatpush.bf16.msra.mxu0 0
    %1286 = vmatpush.bf16.msra.mxu0 0
    %1287 = vmatpush.bf16.msra.mxu0 0
    %1288 = vmatpush.bf16.msra.mxu0 0
    %1289 = vmatpush.bf16.msra.mxu0 0
    %1290 = vmatpush.bf16.msra.mxu0 %v1278
    %1291 = vmatpush.bf16.msra.mxu0 %v1277
    %1292 = vmatmul.bf16.gmra.mxu0 %v1282
    %v1293 = vpop.f32.mrf.mxu0
    %v1294 = vadd.f32 %v1263, %v1293
    %v1295 = vpop.f32.mrf.mxu0
    %1296 = vdwg.mxu0
    %vm1297 = vcmask 58368
    %1298 = vst.msk [vmem:[#allocation11] sm:$0x3] %vm1297, %v1294
    // Predicated region
    $region54: #{tpu_custom_call.1} parent=1 // pred_check
      _
    $region55: #{tpu_custom_call.1} parent=1 // pred_check_branch
      %1300 = sbr.rel (0) target = $region57
    $region56: #{tpu_custom_call.1} parent=1 // pred_region
      %1302 = vsyncadd [#allocation5], 0
      %s1304 = sshll.u32 [#allocation11], 4
      %s1305 = int_to_ptr.vmem [resolvable:$true] %s1304
      %s1306 = sshll.u32 %s9, 4
      %s1307 = int_to_ptr.hbm [resolvable:$true] %s1306
      %1309 = dma.vmem_to_hbm [thread:$0]  %s1305, 32, %s1307, [#allocation5]
    $region57: #{tpu_custom_call.1} parent=1 // pred_fallthru
      _
    // Predicated region
    $region58: #{tpu_custom_call.1} parent=1 // pred_check
      _
    $region59: #{tpu_custom_call.1} parent=1 // pred_check_branch
      %1311 = sbr.rel (0) target = $region61
    $region60: #{tpu_custom_call.1} parent=1 // pred_region
      %1313 = dma.done [#allocation5], 32
    $region61: #{tpu_custom_call.1} parent=1 // pred_fallthru
      _
    %1314 = vsyncpa [#allocation4], 1
    %1315 = vsyncpa [#allocation7], 1
    %1316 = vsyncpa [#allocation10], 1
    %1317 = vsyncpa [#allocation5], 1

</llo_original>
